<compile_context>
chip_gen: v5e
topology: v5e:2x2
jax: 0.10.0
libtpu: 0.0.40
codegen_flags: <defaults>
</compile_context>

<pallas_src>
import functools

import jax
import jax.numpy as jnp
from jax import lax
from jax.experimental import pallas as pl
from jax.experimental.pallas import tpu as pltpu

EPS = 1e-5


# ---------------------------------------------------------------------------
# Fused Pallas kernel (one grid step == one image):
#   conv1(1x1)+bn1+relu -> conv2(3x3,pad=1)+bn2+relu -> conv3(1x1)+bn3
#   -> + identity -> relu
# ---------------------------------------------------------------------------
def _bottleneck_kernel(x_ref, w1_ref, w2_ref, w3_ref,
                       sb1_ref, sb2_ref, sb3_ref, o_ref,
                       p_ref, col_ref, *, H, W):
    HW = H * W
    width = p_ref.shape[1]

    # ---- conv1 (1x1) + bn1 + relu  (bf16 MXU operands, f32 accumulate) ----
    y1 = jnp.dot(x_ref[0], w1_ref[...], preferred_element_type=jnp.float32)
    y1 = jnp.maximum(y1 * sb1_ref[0:1, :] + sb1_ref[1:2, :], 0.0)

    # ---- conv2 (3x3, pad=1, stride=1) via in-VMEM bf16 im2col -------------
    # Flat zero-padded scratch (bf16): rows [W+1, W+1+HW) hold y1 (H*W flat);
    # W+1 zero rows above/below emulate spatial zero padding along H.
    # Tap (kh, kw) is the static row-slice starting at kh*W + kw; the column
    # (w) boundary is handled by masking output positions for kw in {0, 2}.
    pad_zeros = jnp.zeros((W + 1, width), p_ref.dtype)
    p_ref[0:W + 1, :] = pad_zeros
    p_ref[W + 1:W + 1 + HW, :] = y1.astype(p_ref.dtype)
    p_ref[W + 1 + HW:HW + 2 * W + 2, :] = pad_zeros

    w_idx = lax.broadcasted_iota(jnp.int32, (HW, 1), 0) % W   # hoisted
    mask_l = w_idx >= 1            # kw == 0 invalid at w == 0
    mask_r = w_idx <= W - 2        # kw == 2 invalid at w == W-1

    for kh in range(3):
        for kw in range(3):
            t = kh * 3 + kw
            tap = p_ref[kh * W + kw:kh * W + kw + HW, :]      # (HW, width) bf16
            if kw == 0:
                tap = jnp.where(mask_l, tap, jnp.zeros_like(tap))
            elif kw == 2:
                tap = jnp.where(mask_r, tap, jnp.zeros_like(tap))
            col_ref[:, t * width:(t + 1) * width] = tap

    # One MXU matmul with K = 9*width (instead of 9 K=width dots).
    y2 = jnp.dot(col_ref[...], w2_ref[...], preferred_element_type=jnp.float32)
    y2 = jnp.maximum(y2 * sb2_ref[0:1, :] + sb2_ref[1:2, :], 0.0)

    # ---- conv3 (1x1) + bn3 + identity add + relu (f32 epilogue) -----------
    y3 = jnp.dot(y2.astype(jnp.bfloat16), w3_ref[...],
                 preferred_element_type=jnp.float32)
    y3 = y3 * sb3_ref[0:1, :] + sb3_ref[1:2, :]
    # Re-read x here (not kept live across the body) for the residual add.
    o_ref[0] = jnp.maximum(y3 + x_ref[0].astype(jnp.float32), 0.0
                           ).astype(o_ref.dtype)


# ---------------------------------------------------------------------------
# Wrapper: NCHW -> per-image (H*W, C) bf16 tiles, one fused pallas_call
# ---------------------------------------------------------------------------
def bottleneck_forward(x_nchw, params):
    # TODO(synk): stride>1 / downsample branch not implemented (identity
    # residual only, as in the module defaults).
    N, Cin, H, W = x_nchw.shape
    width = params["w1"].shape[1]
    Cout = params["w3"].shape[1]
    assert Cin == Cout, (
        "identity residual requires inplanes == planes*expansion "
        "(downsample branch not implemented)")
    HW = H * W

    # NCHW -> (N, HW, Cin) with the bf16 cast fused into the transpose.
    # TODO(synk): keep (N, HW, C) bf16 between fused blocks to drop this
    # transpose (it is an extra HBM read+write of the activations).
    x2d = jnp.transpose(x_nchw, (0, 2, 3, 1)).reshape(N, HW, Cin)
    x2d = x2d.astype(jnp.bfloat16)

    kernel = functools.partial(_bottleneck_kernel, H=H, W=W)
    out = pl.pallas_call(
        kernel,
        out_shape=jax.ShapeDtypeStruct((N, HW, Cout), jnp.float32),
        grid_spec=pltpu.PrefetchScalarGridSpec(
            num_scalar_prefetch=0,
            grid=(N,),
            in_specs=[
                pl.BlockSpec((1, HW, Cin), lambda n: (n, 0, 0)),       # x tile
                pl.BlockSpec((Cin, width), lambda n: (0, 0)),          # w1
                pl.BlockSpec((9 * width, width), lambda n: (0, 0)),    # w2 (im2col layout)
                pl.BlockSpec((width, Cout), lambda n: (0, 0)),         # w3
                pl.BlockSpec((2, width), lambda n: (0, 0)),            # sb1
                pl.BlockSpec((2, width), lambda n: (0, 0)),            # sb2
                pl.BlockSpec((2, Cout), lambda n: (0, 0)),             # sb3
            ],
            out_specs=pl.BlockSpec((1, HW, Cout), lambda n: (n, 0, 0)),
            scratch_shapes=[
                pltpu.VMEM((HW + 2 * W + 2, width), jnp.bfloat16),     # padded y1
                pltpu.VMEM((HW, 9 * width), jnp.bfloat16),             # im2col slab
            ],
        ),
        compiler_params=pltpu.CompilerParams(
            dimension_semantics=("parallel",),   # images across TensorCores
            vmem_limit_bytes=48 * 1024 * 1024,   # safe on v7x, roomy on v5e/v6e
        ),
    )(x2d, params["w1"], params["w2"], params["w3"],
      params["sb1"], params["sb2"], params["sb3"])

    return jnp.transpose(out.reshape(N, H, W, Cout), (0, 3, 1, 2))


# ---------------------------------------------------------------------------
# Parameter construction (deterministic) and PyTorch-semantics reference
# ---------------------------------------------------------------------------
def fold_bn(gamma, beta, mean, var):
    scale = gamma / jnp.sqrt(var + EPS)
    bias = beta - mean * scale
    return jnp.stack([scale, bias], axis=0)  # (2, C) f32


def make_params(key, inplanes, planes):
    width = planes  # base_width=64, groups=1 -> width = planes
    cout = planes * 4
    ks = jax.random.split(key, 6)
    w1_oihw = 0.1 * jax.random.normal(ks[0], (width, inplanes, 1, 1), jnp.float32)
    w2_oihw = 0.1 * jax.random.normal(ks[1], (width, width, 3, 3), jnp.float32)
    w3_oihw = 0.1 * jax.random.normal(ks[2], (cout, width, 1, 1), jnp.float32)

    def bn_params(k, c):
        k1, k2, k3, k4 = jax.random.split(k, 4)
        gamma = 1.0 + 0.1 * jax.random.normal(k1, (c,), jnp.float32)
        beta = 0.1 * jax.random.normal(k2, (c,), jnp.float32)
        mean = 0.1 * jax.random.normal(k3, (c,), jnp.float32)
        var = 0.5 + jnp.abs(jax.random.normal(k4, (c,), jnp.float32))
        return gamma, beta, mean, var

    bn1 = bn_params(ks[3], width)
    bn2 = bn_params(ks[4], width)
    bn3 = bn_params(ks[5], cout)

    params = {
        # bf16 MXU weights (f32 accumulation happens in-kernel)
        "w1": jnp.transpose(w1_oihw[:, :, 0, 0]).astype(jnp.bfloat16),  # (Cin, width)
        # (kh, kw, cin, cout) -> ((kh*3+kw)*width + cin, cout): matches the
        # in-kernel im2col slab column ordering.
        "w2": jnp.transpose(w2_oihw, (2, 3, 1, 0)).reshape(9 * width, width)
                 .astype(jnp.bfloat16),
        "w3": jnp.transpose(w3_oihw[:, :, 0, 0]).astype(jnp.bfloat16),  # (width, Cout)
        # folded BN scale/bias stay f32
        "sb1": fold_bn(*bn1),
        "sb2": fold_bn(*bn2),
        "sb3": fold_bn(*bn3),
    }
    ref = {"w1": w1_oihw, "w2": w2_oihw, "w3": w3_oihw,
           "bn1": bn1, "bn2": bn2, "bn3": bn3}
    return params, ref


def reference_forward(x, ref):
    """PyTorch-semantics reference in NCHW using lax.conv (eval-mode BN)."""
    dn = ("NCHW", "OIHW", "NCHW")

    def bn(y, p):
        g, b, m, v = p
        g, b, m, v = (t[None, :, None, None] for t in (g, b, m, v))
        return (y - m) / jnp.sqrt(v + EPS) * g + b

    y = lax.conv_general_dilated(x, ref["w1"], (1, 1), "VALID",
                                 dimension_numbers=dn,
                                 precision=lax.Precision.HIGHEST)
    y = jax.nn.relu(bn(y, ref["bn1"]))
    y = lax.conv_general_dilated(y, ref["w2"], (1, 1), ((1, 1), (1, 1)),
                                 dimension_numbers=dn,
                                 precision=lax.Precision.HIGHEST)
    y = jax.nn.relu(bn(y, ref["bn2"]))
    y = lax.conv_general_dilated(y, ref["w3"], (1, 1), "VALID",
                                 dimension_numbers=dn,
                                 precision=lax.Precision.HIGHEST)
    y = bn(y, ref["bn3"])
    return jax.nn.relu(y + x)


if __name__ == "__main__":
    # small shapes: inplanes = planes * expansion so the identity add is valid
    planes = 8
    inplanes = planes * 4          # 32
    N, H, W = 2, 8, 8

    key = jax.random.PRNGKey(0)
    kx, kp = jax.random.split(key)
    x = jax.random.normal(kx, (N, inplanes, H, W), jnp.float32)

    params, ref = make_params(kp, inplanes, planes)

    out = bottleneck_forward(x, params)
    out = jax.block_until_ready(out)

    expected = jax.block_until_ready(reference_forward(x, ref))
    assert out.shape == (N, planes * 4, H, W), out.shape
    max_err = float(jnp.max(jnp.abs(out - expected)))
    # bf16 activations/weights on the MXU (f32 accumulation, f32 epilogue)
    # vs. an all-f32 HIGHEST-precision reference.
    assert jnp.allclose(out, expected, atol=3e-2, rtol=3e-2), max_err

    print("KERNEL_OK")
</pallas_src>

<mosaic_0001>
module attributes {stable_mosaic.version = 11 : i64} {
  func.func @_bottleneck_kernel(%arg0: i32, %arg1: memref<1x64x32xbf16, #tpu.memory_space<vmem>>, %arg2: memref<32x8xbf16, #tpu.memory_space<vmem>>, %arg3: memref<72x8xbf16, #tpu.memory_space<vmem>>, %arg4: memref<8x32xbf16, #tpu.memory_space<vmem>>, %arg5: memref<2x8xf32, #tpu.memory_space<vmem>>, %arg6: memref<2x8xf32, #tpu.memory_space<vmem>>, %arg7: memref<2x32xf32, #tpu.memory_space<vmem>>, %arg8: memref<1x64x32xf32, #tpu.memory_space<vmem>>, %arg9: memref<82x8xbf16, #tpu.memory_space<vmem>>, %arg10: memref<64x72xbf16, #tpu.memory_space<vmem>>) attributes {dimension_semantics = [#tpu.dimension_semantics<parallel>], iteration_bounds = array<i64: 2>, scalar_prefetch = 0 : i64, scratch_operands = 2 : i64, tpu.core_type = #tpu.core_type<tc>, window_params = [{transform_indices = @transform_0, window_bounds = array<i64: 1, 64, 32>}, {pipeline_mode = #tpu.pipeline_mode<synchronous>, transform_indices = @transform_1, window_bounds = array<i64: 32, 8>}, {pipeline_mode = #tpu.pipeline_mode<synchronous>, transform_indices = @transform_2, window_bounds = array<i64: 72, 8>}, {pipeline_mode = #tpu.pipeline_mode<synchronous>, transform_indices = @transform_3, window_bounds = array<i64: 8, 32>}, {pipeline_mode = #tpu.pipeline_mode<synchronous>, transform_indices = @transform_4, window_bounds = array<i64: 2, 8>}, {pipeline_mode = #tpu.pipeline_mode<synchronous>, transform_indices = @transform_5, window_bounds = array<i64: 2, 8>}, {pipeline_mode = #tpu.pipeline_mode<synchronous>, transform_indices = @transform_6, window_bounds = array<i64: 2, 32>}, {transform_indices = @transform_7, window_bounds = array<i64: 1, 64, 32>}]} {
    %c0 = arith.constant 0 : index
    %c0_0 = arith.constant 0 : index
    %c0_1 = arith.constant 0 : index
    %0 = vector.load %arg1[%c0, %c0_0, %c0_1] : memref<1x64x32xbf16, #tpu.memory_space<vmem>>, vector<1x64x32xbf16>
    %1 = vector.shape_cast %0 : vector<1x64x32xbf16> to vector<64x32xbf16>
    %c0_2 = arith.constant 0 : index
    %c0_3 = arith.constant 0 : index
    %2 = vector.load %arg2[%c0_2, %c0_3] : memref<32x8xbf16, #tpu.memory_space<vmem>>, vector<32x8xbf16>
    %cst = arith.constant dense<0.000000e+00> : vector<64x8xf32>
    %3 = tpu.matmul %1, %2, %cst {dimension_numbers = #tpu.dot_dimension_numbers<[1], [0], [0], [1], [0, 0, 1, 1], [], []>} : vector<64x32xbf16>, vector<32x8xbf16>, vector<64x8xf32> -> vector<64x8xf32>
    %c0_4 = arith.constant 0 : index
    %c0_5 = arith.constant 0 : index
    %4 = vector.load %arg5[%c0_4, %c0_5] : memref<2x8xf32, #tpu.memory_space<vmem>>, vector<1x8xf32>
    %5 = vector.broadcast %4 : vector<1x8xf32> to vector<64x8xf32>
    %6 = arith.mulf %3, %5 : vector<64x8xf32>
    %c1 = arith.constant 1 : index
    %c0_6 = arith.constant 0 : index
    %7 = vector.load %arg5[%c1, %c0_6] : memref<2x8xf32, #tpu.memory_space<vmem>>, vector<1x8xf32>
    %8 = vector.broadcast %7 : vector<1x8xf32> to vector<64x8xf32>
    %9 = arith.addf %6, %8 : vector<64x8xf32>
    %cst_7 = arith.constant 0.000000e+00 : f32
    %10 = vector.broadcast %cst_7 : f32 to vector<64x8xf32>
    %11 = arith.maximumf %9, %10 : vector<64x8xf32>
    %cst_8 = arith.constant 0.000000e+00 : bf16
    %12 = vector.broadcast %cst_8 : bf16 to vector<9x8xbf16>
    %c0_9 = arith.constant 0 : index
    %c0_10 = arith.constant 0 : index
    %13 = vector.load %arg9[%c0_9, %c0_10] : memref<82x8xbf16, #tpu.memory_space<vmem>>, vector<9x8xbf16>
    tpu.vector_store %arg9[%c0_9, %c0_10], %12 {strides = array<i32>} : memref<82x8xbf16, #tpu.memory_space<vmem>>, vector<9x8xbf16>,
    %14 = arith.truncf %11 : vector<64x8xf32> to vector<64x8xbf16>
    %c9 = arith.constant 9 : index
    %c0_11 = arith.constant 0 : index
    %15 = vector.load %arg9[%c9, %c0_11] : memref<82x8xbf16, #tpu.memory_space<vmem>>, vector<64x8xbf16>
    tpu.vector_store %arg9[%c9, %c0_11], %14 {strides = array<i32>} : memref<82x8xbf16, #tpu.memory_space<vmem>>, vector<64x8xbf16>,
    %c73 = arith.constant 73 : index
    %c0_12 = arith.constant 0 : index
    %16 = vector.load %arg9[%c73, %c0_12] : memref<82x8xbf16, #tpu.memory_space<vmem>>, vector<9x8xbf16>
    tpu.vector_store %arg9[%c73, %c0_12], %12 {strides = array<i32>} : memref<82x8xbf16, #tpu.memory_space<vmem>>, vector<9x8xbf16>,
    %17 = tpu.iota {dimensions = array<i32: 0>} : vector<64x1xi32>
    %c8_i32 = arith.constant 8 : i32
    %c0_i32 = arith.constant 0 : i32
    %18 = arith.cmpi eq, %c8_i32, %c0_i32 : i32
    %c1_i32 = arith.constant 1 : i32
    %19 = arith.select %18, %c1_i32, %c8_i32 : i32
    %20 = vector.broadcast %19 : i32 to vector<64x1xi32>
    %21 = arith.remsi %17, %20 : vector<64x1xi32>
    %c0_i32_13 = arith.constant 0 : i32
    %22 = vector.broadcast %c0_i32_13 : i32 to vector<64x1xi32>
    %23 = arith.cmpi ne, %21, %22 : vector<64x1xi32>
    %c0_i32_14 = arith.constant 0 : i32
    %24 = vector.broadcast %c0_i32_14 : i32 to vector<64x1xi32>
    %25 = arith.cmpi slt, %21, %24 : vector<64x1xi32>
    %c0_i32_15 = arith.constant 0 : i32
    %26 = arith.cmpi slt, %19, %c0_i32_15 : i32
    %27 = vector.broadcast %26 : i1 to vector<64x1xi1>
    %28 = vector.broadcast %27 : vector<64x1xi1> to vector<64x1xi1>
    %29 = arith.xori %25, %28 : vector<64x1xi1>
    %30 = arith.andi %29, %23 : vector<64x1xi1>
    %31 = vector.broadcast %19 : i32 to vector<64x1xi32>
    %32 = arith.addi %21, %31 : vector<64x1xi32>
    %33 = arith.select %30, %32, %21 : vector<64x1xi1>, vector<64x1xi32>
    %c1_i32_16 = arith.constant 1 : i32
    %34 = vector.broadcast %c1_i32_16 : i32 to vector<64x1xi32>
    %35 = arith.cmpi sge, %33, %34 : vector<64x1xi32>
    %c6_i32 = arith.constant 6 : i32
    %36 = vector.broadcast %c6_i32 : i32 to vector<64x1xi32>
    %37 = arith.cmpi sle, %33, %36 : vector<64x1xi32>
    %c0_17 = arith.constant 0 : index
    %c0_18 = arith.constant 0 : index
    %38 = vector.load %arg9[%c0_17, %c0_18] : memref<82x8xbf16, #tpu.memory_space<vmem>>, vector<64x8xbf16>
    %cst_19 = arith.constant 0.000000e+00 : bf16
    %39 = vector.broadcast %cst_19 : bf16 to vector<64x8xbf16>
    %40 = vector.shape_cast %35 : vector<64x1xi1> to vector<64x1xi1>
    %41 = vector.broadcast %40 : vector<64x1xi1> to vector<64x8xi1>
    %42 = arith.select %41, %38, %39 : vector<64x8xi1>, vector<64x8xbf16>
    %c0_20 = arith.constant 0 : index
    %c0_21 = arith.constant 0 : index
    %43 = vector.load %arg10[%c0_20, %c0_21] : memref<64x72xbf16, #tpu.memory_space<vmem>>, vector<64x8xbf16>
    tpu.vector_store %arg10[%c0_20, %c0_21], %42 {strides = array<i32>} : memref<64x72xbf16, #tpu.memory_space<vmem>>, vector<64x8xbf16>,
    %c1_22 = arith.constant 1 : index
    %c0_23 = arith.constant 0 : index
    %44 = vector.load %arg9[%c1_22, %c0_23] : memref<82x8xbf16, #tpu.memory_space<vmem>>, vector<64x8xbf16>
    %c0_24 = arith.constant 0 : index
    %c8 = arith.constant 8 : index
    %45 = vector.load %arg10[%c0_24, %c8] : memref<64x72xbf16, #tpu.memory_space<vmem>>, vector<64x8xbf16>
    tpu.vector_store %arg10[%c0_24, %c8], %44 {strides = array<i32>} : memref<64x72xbf16, #tpu.memory_space<vmem>>, vector<64x8xbf16>,
    %c2 = arith.constant 2 : index
    %c0_25 = arith.constant 0 : index
    %46 = vector.load %arg9[%c2, %c0_25] : memref<82x8xbf16, #tpu.memory_space<vmem>>, vector<64x8xbf16>
    %cst_26 = arith.constant 0.000000e+00 : bf16
    %47 = vector.broadcast %cst_26 : bf16 to vector<64x8xbf16>
    %48 = vector.shape_cast %37 : vector<64x1xi1> to vector<64x1xi1>
    %49 = vector.broadcast %48 : vector<64x1xi1> to vector<64x8xi1>
    %50 = arith.select %49, %46, %47 : vector<64x8xi1>, vector<64x8xbf16>
    %c0_27 = arith.constant 0 : index
    %c16 = arith.constant 16 : index
    %51 = vector.load %arg10[%c0_27, %c16] : memref<64x72xbf16, #tpu.memory_space<vmem>>, vector<64x8xbf16>
    tpu.vector_store %arg10[%c0_27, %c16], %50 {strides = array<i32>} : memref<64x72xbf16, #tpu.memory_space<vmem>>, vector<64x8xbf16>,
    %c8_28 = arith.constant 8 : index
    %c0_29 = arith.constant 0 : index
    %52 = vector.load %arg9[%c8_28, %c0_29] : memref<82x8xbf16, #tpu.memory_space<vmem>>, vector<64x8xbf16>
    %cst_30 = arith.constant 0.000000e+00 : bf16
    %53 = vector.broadcast %cst_30 : bf16 to vector<64x8xbf16>
    %54 = vector.shape_cast %35 : vector<64x1xi1> to vector<64x1xi1>
    %55 = vector.broadcast %54 : vector<64x1xi1> to vector<64x8xi1>
    %56 = arith.select %55, %52, %53 : vector<64x8xi1>, vector<64x8xbf16>
    %c0_31 = arith.constant 0 : index
    %c24 = arith.constant 24 : index
    %57 = vector.load %arg10[%c0_31, %c24] : memref<64x72xbf16, #tpu.memory_space<vmem>>, vector<64x8xbf16>
    tpu.vector_store %arg10[%c0_31, %c24], %56 {strides = array<i32>} : memref<64x72xbf16, #tpu.memory_space<vmem>>, vector<64x8xbf16>,
    %c9_32 = arith.constant 9 : index
    %c0_33 = arith.constant 0 : index
    %58 = vector.load %arg9[%c9_32, %c0_33] : memref<82x8xbf16, #tpu.memory_space<vmem>>, vector<64x8xbf16>
    %c0_34 = arith.constant 0 : index
    %c32 = arith.constant 32 : index
    %59 = vector.load %arg10[%c0_34, %c32] : memref<64x72xbf16, #tpu.memory_space<vmem>>, vector<64x8xbf16>
    tpu.vector_store %arg10[%c0_34, %c32], %58 {strides = array<i32>} : memref<64x72xbf16, #tpu.memory_space<vmem>>, vector<64x8xbf16>,
    %c10 = arith.constant 10 : index
    %c0_35 = arith.constant 0 : index
    %60 = vector.load %arg9[%c10, %c0_35] : memref<82x8xbf16, #tpu.memory_space<vmem>>, vector<64x8xbf16>
    %cst_36 = arith.constant 0.000000e+00 : bf16
    %61 = vector.broadcast %cst_36 : bf16 to vector<64x8xbf16>
    %62 = vector.shape_cast %37 : vector<64x1xi1> to vector<64x1xi1>
    %63 = vector.broadcast %62 : vector<64x1xi1> to vector<64x8xi1>
    %64 = arith.select %63, %60, %61 : vector<64x8xi1>, vector<64x8xbf16>
    %c0_37 = arith.constant 0 : index
    %c40 = arith.constant 40 : index
    %65 = vector.load %arg10[%c0_37, %c40] : memref<64x72xbf16, #tpu.memory_space<vmem>>, vector<64x8xbf16>
    tpu.vector_store %arg10[%c0_37, %c40], %64 {strides = array<i32>} : memref<64x72xbf16, #tpu.memory_space<vmem>>, vector<64x8xbf16>,
    %c16_38 = arith.constant 16 : index
    %c0_39 = arith.constant 0 : index
    %66 = vector.load %arg9[%c16_38, %c0_39] : memref<82x8xbf16, #tpu.memory_space<vmem>>, vector<64x8xbf16>
    %cst_40 = arith.constant 0.000000e+00 : bf16
    %67 = vector.broadcast %cst_40 : bf16 to vector<64x8xbf16>
    %68 = vector.shape_cast %35 : vector<64x1xi1> to vector<64x1xi1>
    %69 = vector.broadcast %68 : vector<64x1xi1> to vector<64x8xi1>
    %70 = arith.select %69, %66, %67 : vector<64x8xi1>, vector<64x8xbf16>
    %c0_41 = arith.constant 0 : index
    %c48 = arith.constant 48 : index
    %71 = vector.load %arg10[%c0_41, %c48] : memref<64x72xbf16, #tpu.memory_space<vmem>>, vector<64x8xbf16>
    tpu.vector_store %arg10[%c0_41, %c48], %70 {strides = array<i32>} : memref<64x72xbf16, #tpu.memory_space<vmem>>, vector<64x8xbf16>,
    %c17 = arith.constant 17 : index
    %c0_42 = arith.constant 0 : index
    %72 = vector.load %arg9[%c17, %c0_42] : memref<82x8xbf16, #tpu.memory_space<vmem>>, vector<64x8xbf16>
    %c0_43 = arith.constant 0 : index
    %c56 = arith.constant 56 : index
    %73 = vector.load %arg10[%c0_43, %c56] : memref<64x72xbf16, #tpu.memory_space<vmem>>, vector<64x8xbf16>
    tpu.vector_store %arg10[%c0_43, %c56], %72 {strides = array<i32>} : memref<64x72xbf16, #tpu.memory_space<vmem>>, vector<64x8xbf16>,
    %c18 = arith.constant 18 : index
    %c0_44 = arith.constant 0 : index
    %74 = vector.load %arg9[%c18, %c0_44] : memref<82x8xbf16, #tpu.memory_space<vmem>>, vector<64x8xbf16>
    %cst_45 = arith.constant 0.000000e+00 : bf16
    %75 = vector.broadcast %cst_45 : bf16 to vector<64x8xbf16>
    %76 = vector.shape_cast %37 : vector<64x1xi1> to vector<64x1xi1>
    %77 = vector.broadcast %76 : vector<64x1xi1> to vector<64x8xi1>
    %78 = arith.select %77, %74, %75 : vector<64x8xi1>, vector<64x8xbf16>
    %c0_46 = arith.constant 0 : index
    %c64 = arith.constant 64 : index
    %79 = vector.load %arg10[%c0_46, %c64] : memref<64x72xbf16, #tpu.memory_space<vmem>>, vector<64x8xbf16>
    tpu.vector_store %arg10[%c0_46, %c64], %78 {strides = array<i32>} : memref<64x72xbf16, #tpu.memory_space<vmem>>, vector<64x8xbf16>,
    %c0_47 = arith.constant 0 : index
    %c0_48 = arith.constant 0 : index
    %80 = vector.load %arg10[%c0_47, %c0_48] : memref<64x72xbf16, #tpu.memory_space<vmem>>, vector<64x72xbf16>
    %c0_49 = arith.constant 0 : index
    %c0_50 = arith.constant 0 : index
    %81 = vector.load %arg3[%c0_49, %c0_50] : memref<72x8xbf16, #tpu.memory_space<vmem>>, vector<72x8xbf16>
    %cst_51 = arith.constant dense<0.000000e+00> : vector<64x8xf32>
    %82 = tpu.matmul %80, %81, %cst_51 {dimension_numbers = #tpu.dot_dimension_numbers<[1], [0], [0], [1], [0, 0, 1, 1], [], []>} : vector<64x72xbf16>, vector<72x8xbf16>, vector<64x8xf32> -> vector<64x8xf32>
    %c0_52 = arith.constant 0 : index
    %c0_53 = arith.constant 0 : index
    %83 = vector.load %arg6[%c0_52, %c0_53] : memref<2x8xf32, #tpu.memory_space<vmem>>, vector<1x8xf32>
    %84 = vector.broadcast %83 : vector<1x8xf32> to vector<64x8xf32>
    %85 = arith.mulf %82, %84 : vector<64x8xf32>
    %c1_54 = arith.constant 1 : index
    %c0_55 = arith.constant 0 : index
    %86 = vector.load %arg6[%c1_54, %c0_55] : memref<2x8xf32, #tpu.memory_space<vmem>>, vector<1x8xf32>
    %87 = vector.broadcast %86 : vector<1x8xf32> to vector<64x8xf32>
    %88 = arith.addf %85, %87 : vector<64x8xf32>
    %cst_56 = arith.constant 0.000000e+00 : f32
    %89 = vector.broadcast %cst_56 : f32 to vector<64x8xf32>
    %90 = arith.maximumf %88, %89 : vector<64x8xf32>
    %91 = arith.truncf %90 : vector<64x8xf32> to vector<64x8xbf16>
    %c0_57 = arith.constant 0 : index
    %c0_58 = arith.constant 0 : index
    %92 = vector.load %arg4[%c0_57, %c0_58] : memref<8x32xbf16, #tpu.memory_space<vmem>>, vector<8x32xbf16>
    %cst_59 = arith.constant dense<0.000000e+00> : vector<64x32xf32>
    %93 = tpu.matmul %91, %92, %cst_59 {dimension_numbers = #tpu.dot_dimension_numbers<[1], [0], [0], [1], [0, 0, 1, 1], [], []>} : vector<64x8xbf16>, vector<8x32xbf16>, vector<64x32xf32> -> vector<64x32xf32>
    %c0_60 = arith.constant 0 : index
    %c0_61 = arith.constant 0 : index
    %94 = vector.load %arg7[%c0_60, %c0_61] : memref<2x32xf32, #tpu.memory_space<vmem>>, vector<1x32xf32>
    %95 = vector.broadcast %94 : vector<1x32xf32> to vector<64x32xf32>
    %96 = arith.mulf %93, %95 : vector<64x32xf32>
    %c1_62 = arith.constant 1 : index
    %c0_63 = arith.constant 0 : index
    %97 = vector.load %arg7[%c1_62, %c0_63] : memref<2x32xf32, #tpu.memory_space<vmem>>, vector<1x32xf32>
    %98 = vector.broadcast %97 : vector<1x32xf32> to vector<64x32xf32>
    %99 = arith.addf %96, %98 : vector<64x32xf32>
    %c0_64 = arith.constant 0 : index
    %c0_65 = arith.constant 0 : index
    %c0_66 = arith.constant 0 : index
    %100 = vector.load %arg1[%c0_64, %c0_65, %c0_66] : memref<1x64x32xbf16, #tpu.memory_space<vmem>>, vector<1x64x32xbf16>
    %101 = vector.shape_cast %100 : vector<1x64x32xbf16> to vector<64x32xbf16>
    %102 = arith.extf %101 : vector<64x32xbf16> to vector<64x32xf32>
    %103 = arith.addf %99, %102 : vector<64x32xf32>
    %cst_67 = arith.constant 0.000000e+00 : f32
    %104 = vector.broadcast %cst_67 : f32 to vector<64x32xf32>
    %105 = arith.maximumf %103, %104 : vector<64x32xf32>
    %c0_68 = arith.constant 0 : index
    %c0_69 = arith.constant 0 : index
    %c0_70 = arith.constant 0 : index
    %106 = vector.load %arg8[%c0_68, %c0_69, %c0_70] : memref<1x64x32xf32, #tpu.memory_space<vmem>>, vector<1x64x32xf32>
    %107 = vector.shape_cast %106 : vector<1x64x32xf32> to vector<64x32xf32>
    %108 = vector.shape_cast %105 : vector<64x32xf32> to vector<1x64x32xf32>
    tpu.vector_store %arg8[%c0_68, %c0_69, %c0_70], %108 {strides = array<i32>} : memref<1x64x32xf32, #tpu.memory_space<vmem>>, vector<1x64x32xf32>,
    return
  }
  func.func @transform_0(%arg0: i32) -> (i32, i32, i32) {
    %c0_i32 = arith.constant 0 : i32
    %c0_i32_0 = arith.constant 0 : i32
    %c0_i32_1 = arith.constant 0 : i32
    return %arg0, %c0_i32, %c0_i32_0 : i32, i32, i32
  }
  func.func @transform_1(%arg0: i32) -> (i32, i32) {
    %c0_i32 = arith.constant 0 : i32
    %c0_i32_0 = arith.constant 0 : i32
    %c0_i32_1 = arith.constant 0 : i32
    return %c0_i32, %c0_i32_0 : i32, i32
  }
  func.func @transform_2(%arg0: i32) -> (i32, i32) {
    %c0_i32 = arith.constant 0 : i32
    %c0_i32_0 = arith.constant 0 : i32
    %c0_i32_1 = arith.constant 0 : i32
    return %c0_i32, %c0_i32_0 : i32, i32
  }
  func.func @transform_3(%arg0: i32) -> (i32, i32) {
    %c0_i32 = arith.constant 0 : i32
    %c0_i32_0 = arith.constant 0 : i32
    %c0_i32_1 = arith.constant 0 : i32
    return %c0_i32, %c0_i32_0 : i32, i32
  }
  func.func @transform_4(%arg0: i32) -> (i32, i32) {
    %c0_i32 = arith.constant 0 : i32
    %c0_i32_0 = arith.constant 0 : i32
    %c0_i32_1 = arith.constant 0 : i32
    return %c0_i32, %c0_i32_0 : i32, i32
  }
  func.func @transform_5(%arg0: i32) -> (i32, i32) {
    %c0_i32 = arith.constant 0 : i32
    %c0_i32_0 = arith.constant 0 : i32
    %c0_i32_1 = arith.constant 0 : i32
    return %c0_i32, %c0_i32_0 : i32, i32
  }
  func.func @transform_6(%arg0: i32) -> (i32, i32) {
    %c0_i32 = arith.constant 0 : i32
    %c0_i32_0 = arith.constant 0 : i32
    %c0_i32_1 = arith.constant 0 : i32
    return %c0_i32, %c0_i32_0 : i32, i32
  }
  func.func @transform_7(%arg0: i32) -> (i32, i32, i32) {
    %c0_i32 = arith.constant 0 : i32
    %c0_i32_0 = arith.constant 0 : i32
    %c0_i32_1 = arith.constant 0 : i32
    return %arg0, %c0_i32, %c0_i32_0 : i32, i32, i32
  }
}

</mosaic_0001>

<llo_original>
// kernel: tpu_custom_call.1
$region0: #{tpu_custom_call.1}
  #allocation0 [shape = 'u32[]', space=smem, size = 0x4, offset = 0x4, fixed_abs, tag = 'smem constant byte address 0x4 - core index']
  #allocation1 [shape = 'u32[72,128]{1,0:T(1,128)}', space=vmem, size = 0x9000, scoped, tag = 'internal scratch']
  #allocation2 [shape = 'bf16[82,8]{1,0:T(8,128)(2,1)}', space=vmem, size = 0x5800, scoped, tag = 'scratch operand']
  #allocation3 [shape = 'bf16[64,72]{1,0:T(8,128)(2,1)}', space=vmem, size = 0x4000, scoped, tag = 'scratch operand']
  %s0 = inlined_call_operand.vmem [shape: bf16[2,64,32], index: 0, kind: input, shape index: {}]
  %s1 = inlined_call_operand.vmem [shape: bf16[32,8], index: 1, kind: input, shape index: {}]
  %s2 = inlined_call_operand.vmem [shape: bf16[72,8], index: 2, kind: input, shape index: {}]
  %s3 = inlined_call_operand.vmem [shape: bf16[8,32], index: 3, kind: input, shape index: {}]
  %s4 = inlined_call_operand.vmem [shape: f32[2,8], index: 4, kind: input, shape index: {}]
  %s5 = inlined_call_operand.vmem [shape: f32[2,8], index: 5, kind: input, shape index: {}]
  %s6 = inlined_call_operand.vmem [shape: f32[2,32], index: 6, kind: input, shape index: {}]
  %s7 = inlined_call_operand.vmem [shape: f32[2,64,32], index: 7, kind: output, shape index: {}]
  %s8 = sld [smem:[#allocation0]]
  $region61: #{tpu_custom_call.1} parent=0
    _
  %s10 = ssub.s32 1, %s8
  %s11 = scalar_select 0, %s10, %s8
  loop: start=0, step=1, limit=4
  $region2: #{tpu_custom_call.1} parent=0 // loop_pre_header
    _
  $region3: #{tpu_custom_call.1} parent=0 // loop_header
    %s13 = sphi 0, %s17
    %p14 = scmp.ge.s32.totalorder %s13, 4
    %s23 = sphi 0, %s25
    %s26 = sphi 0, %s23
    %s27 = sphi 0, %s26
    %s43 = sphi 0, %s27
    %s47 = sphi 0, %s47
    %s49 = sphi 0, %s47
    %s50 = sphi 0, %s49
    %s64 = sphi 0, %s50
    %s68 = sphi 0, %s68
    %s70 = sphi 0, %s68
    %s71 = sphi 0, %s70
    %s85 = sphi 0, %s71
    %s89 = sphi 0, %s89
    %s91 = sphi 0, %s89
    %s92 = sphi 0, %s91
    %s106 = sphi 0, %s92
    %s110 = sphi 0, %s110
    %s112 = sphi 0, %s110
    %s113 = sphi 0, %s112
    %s127 = sphi 0, %s113
    %s131 = sphi 0, %s131
    %s133 = sphi 0, %s131
    %s134 = sphi 0, %s133
    %s148 = sphi 0, %s134
    %s152 = sphi 0, %s152
    %s154 = sphi 0, %s152
    %s155 = sphi 0, %s154
    %s169 = sphi 0, %s155
    %s175 = sphi 0, %s177
    %s178 = sphi 0, %s175
    %s179 = sphi 0, %s178
    %s195 = sphi 0, %s179
  $region4: #{tpu_custom_call.1} parent=0 // loop_header_branch
    %16 = sbr.rel (%p14) target = $region8
  $region5: #{tpu_custom_call.1} parent=0 // loop_body
    %s18 = ssub.s32 %s13, 1
    %s19 = ssub.s32 %s13, 2
    %s20 = sadd.s32 %s13, 1
    %s21 = ssub.s32 %s13, %s20
    %p22 = scmp.eq.s32.totalorder %s21, 0
    %s24 = sadd.s32 %s23, 1
    %s25 = scalar_select %p22, %s23, %s24
    %p28 = pneg %p22
    %p29 = scmp.eq.s32.totalorder %s13, 1
    %p30 = por %p28, %p29
    %p31 = scmp.ne.s32.totalorder %s23, %s26
    %p32 = scmp.eq.s32.totalorder %s13, 0
    %p33 = por %p31, %p32
    %p34 = scmp.ne.s32.totalorder %s23, %s26
    %p35 = scmp.eq.s32.totalorder %s18, 1
    %p36 = por %p34, %p35
    %p37 = scmp.ne.s32.totalorder %s26, %s27
    %p38 = scmp.eq.s32.totalorder %s18, 0
    %p39 = por %p37, %p38
    %p40 = scmp.ne.s32.totalorder %s26, %s27
    %p41 = scmp.eq.s32.totalorder %s19, 1
    %p42 = por %p40, %p41
    %p44 = scmp.ne.s32.totalorder %s27, %s43
    %p45 = scmp.eq.s32.totalorder %s19, 0
    %p46 = por %p44, %p45
    %s48 = sadd.s32 %s47, 1
    %p51 = scmp.eq.s32.totalorder %s13, 1
    %p52 = scmp.ne.s32.totalorder %s47, %s49
    %p53 = scmp.eq.s32.totalorder %s13, 0
    %p54 = por %p52, %p53
    %p55 = scmp.ne.s32.totalorder %s47, %s49
    %p56 = scmp.eq.s32.totalorder %s18, 1
    %p57 = por %p55, %p56
    %p58 = scmp.ne.s32.totalorder %s49, %s50
    %p59 = scmp.eq.s32.totalorder %s18, 0
    %p60 = por %p58, %p59
    %p61 = scmp.ne.s32.totalorder %s49, %s50
    %p62 = scmp.eq.s32.totalorder %s19, 1
    %p63 = por %p61, %p62
    %p65 = scmp.ne.s32.totalorder %s50, %s64
    %p66 = scmp.eq.s32.totalorder %s19, 0
    %p67 = por %p65, %p66
    %s69 = sadd.s32 %s68, 1
    %p72 = scmp.eq.s32.totalorder %s13, 1
    %p73 = scmp.ne.s32.totalorder %s68, %s70
    %p74 = scmp.eq.s32.totalorder %s13, 0
    %p75 = por %p73, %p74
    %p76 = scmp.ne.s32.totalorder %s68, %s70
    %p77 = scmp.eq.s32.totalorder %s18, 1
    %p78 = por %p76, %p77
    %p79 = scmp.ne.s32.totalorder %s70, %s71
    %p80 = scmp.eq.s32.totalorder %s18, 0
    %p81 = por %p79, %p80
    %p82 = scmp.ne.s32.totalorder %s70, %s71
    %p83 = scmp.eq.s32.totalorder %s19, 1
    %p84 = por %p82, %p83
    %p86 = scmp.ne.s32.totalorder %s71, %s85
    %p87 = scmp.eq.s32.totalorder %s19, 0
    %p88 = por %p86, %p87
    %s90 = sadd.s32 %s89, 1
    %p93 = scmp.eq.s32.totalorder %s13, 1
    %p94 = scmp.ne.s32.totalorder %s89, %s91
    %p95 = scmp.eq.s32.totalorder %s13, 0
    %p96 = por %p94, %p95
    %p97 = scmp.ne.s32.totalorder %s89, %s91
    %p98 = scmp.eq.s32.totalorder %s18, 1
    %p99 = por %p97, %p98
    %p100 = scmp.ne.s32.totalorder %s91, %s92
    %p101 = scmp.eq.s32.totalorder %s18, 0
    %p102 = por %p100, %p101
    %p103 = scmp.ne.s32.totalorder %s91, %s92
    %p104 = scmp.eq.s32.totalorder %s19, 1
    %p105 = por %p103, %p104
    %p107 = scmp.ne.s32.totalorder %s92, %s106
    %p108 = scmp.eq.s32.totalorder %s19, 0
    %p109 = por %p107, %p108
    %s111 = sadd.s32 %s110, 1
    %p114 = scmp.eq.s32.totalorder %s13, 1
    %p115 = scmp.ne.s32.totalorder %s110, %s112
    %p116 = scmp.eq.s32.totalorder %s13, 0
    %p117 = por %p115, %p116
    %p118 = scmp.ne.s32.totalorder %s110, %s112
    %p119 = scmp.eq.s32.totalorder %s18, 1
    %p120 = por %p118, %p119
    %p121 = scmp.ne.s32.totalorder %s112, %s113
    %p122 = scmp.eq.s32.totalorder %s18, 0
    %p123 = por %p121, %p122
    %p124 = scmp.ne.s32.totalorder %s112, %s113
    %p125 = scmp.eq.s32.totalorder %s19, 1
    %p126 = por %p124, %p125
    %p128 = scmp.ne.s32.totalorder %s113, %s127
    %p129 = scmp.eq.s32.totalorder %s19, 0
    %p130 = por %p128, %p129
    %s132 = sadd.s32 %s131, 1
    %p135 = scmp.eq.s32.totalorder %s13, 1
    %p136 = scmp.ne.s32.totalorder %s131, %s133
    %p137 = scmp.eq.s32.totalorder %s13, 0
    %p138 = por %p136, %p137
    %p139 = scmp.ne.s32.totalorder %s131, %s133
    %p140 = scmp.eq.s32.totalorder %s18, 1
    %p141 = por %p139, %p140
    %p142 = scmp.ne.s32.totalorder %s133, %s134
    %p143 = scmp.eq.s32.totalorder %s18, 0
    %p144 = por %p142, %p143
    %p145 = scmp.ne.s32.totalorder %s133, %s134
    %p146 = scmp.eq.s32.totalorder %s19, 1
    %p147 = por %p145, %p146
    %p149 = scmp.ne.s32.totalorder %s134, %s148
    %p150 = scmp.eq.s32.totalorder %s19, 0
    %p151 = por %p149, %p150
    %s153 = sadd.s32 %s152, 1
    %p156 = scmp.eq.s32.totalorder %s13, 1
    %p157 = scmp.ne.s32.totalorder %s152, %s154
    %p158 = scmp.eq.s32.totalorder %s13, 0
    %p159 = por %p157, %p158
    %p160 = scmp.ne.s32.totalorder %s152, %s154
    %p161 = scmp.eq.s32.totalorder %s18, 1
    %p162 = por %p160, %p161
    %p163 = scmp.ne.s32.totalorder %s154, %s155
    %p164 = scmp.eq.s32.totalorder %s18, 0
    %p165 = por %p163, %p164
    %p166 = scmp.ne.s32.totalorder %s154, %s155
    %p167 = scmp.eq.s32.totalorder %s19, 1
    %p168 = por %p166, %p167
    %p170 = scmp.ne.s32.totalorder %s155, %s169
    %p171 = scmp.eq.s32.totalorder %s19, 0
    %p172 = por %p170, %p171
    %s173 = ssub.s32 %s13, %s20
    %p174 = scmp.eq.s32.totalorder %s173, 0
    %s176 = sadd.s32 %s175, 1
    %s177 = scalar_select %p174, %s175, %s176
    %p180 = pneg %p174
    %p181 = scmp.eq.s32.totalorder %s13, 1
    %p182 = por %p180, %p181
    %p183 = scmp.ne.s32.totalorder %s175, %s178
    %p184 = scmp.eq.s32.totalorder %s13, 0
    %p185 = por %p183, %p184
    %p186 = scmp.ne.s32.totalorder %s175, %s178
    %p187 = scmp.eq.s32.totalorder %s18, 1
    %p188 = por %p186, %p187
    %p189 = scmp.ne.s32.totalorder %s178, %s179
    %p190 = scmp.eq.s32.totalorder %s18, 0
    %p191 = por %p189, %p190
    %p192 = scmp.ne.s32.totalorder %s178, %s179
    %p193 = scmp.eq.s32.totalorder %s19, 1
    %p194 = por %p192, %p193
    %p196 = scmp.ne.s32.totalorder %s179, %s195
    %p197 = scmp.eq.s32.totalorder %s19, 0
    %p198 = por %p196, %p197
    %p199 = scmp.le.s32.totalorder 1, %s13
    %p200 = scmp.lt.s32.totalorder %s13, 3
    %p201 = pnand %p199, %p200
    %p202 = pneg %p201
    // Predicated region
    $region9: #{tpu_custom_call.1} parent=5 // pred_check
      _
    $region10: #{tpu_custom_call.1} parent=5 // pred_check_branch
      %204 = sbr.rel (%p201) target = $region12
    $region11: #{tpu_custom_call.1} parent=5 // pred_region
      %s205 = ssub.s32 %s13, 1
      // Predicated region
      $region13: #{tpu_custom_call.1} parent=11 // pred_check
        %p206 = pneg %p60
      $region14: #{tpu_custom_call.1} parent=11 // pred_check_branch
        %208 = sbr.rel (%p206) target = $region16
      $region15: #{tpu_custom_call.1} parent=11 // pred_region
        _
      $region16: #{tpu_custom_call.1} parent=11 // pred_fallthru
        _
      // Predicated region
      $region17: #{tpu_custom_call.1} parent=11 // pred_check
        %p209 = pneg %p81
      $region18: #{tpu_custom_call.1} parent=11 // pred_check_branch
        %211 = sbr.rel (%p209) target = $region20
      $region19: #{tpu_custom_call.1} parent=11 // pred_region
        _
      $region20: #{tpu_custom_call.1} parent=11 // pred_fallthru
        _
      // Predicated region
      $region21: #{tpu_custom_call.1} parent=11 // pred_check
        %p212 = pneg %p102
      $region22: #{tpu_custom_call.1} parent=11 // pred_check_branch
        %214 = sbr.rel (%p212) target = $region24
      $region23: #{tpu_custom_call.1} parent=11 // pred_region
        _
      $region24: #{tpu_custom_call.1} parent=11 // pred_fallthru
        _
      // Predicated region
      $region25: #{tpu_custom_call.1} parent=11 // pred_check
        %p215 = pneg %p123
      $region26: #{tpu_custom_call.1} parent=11 // pred_check_branch
        %217 = sbr.rel (%p215) target = $region28
      $region27: #{tpu_custom_call.1} parent=11 // pred_region
        _
      $region28: #{tpu_custom_call.1} parent=11 // pred_fallthru
        _
      // Predicated region
      $region29: #{tpu_custom_call.1} parent=11 // pred_check
        %p218 = pneg %p144
      $region30: #{tpu_custom_call.1} parent=11 // pred_check_branch
        %220 = sbr.rel (%p218) target = $region32
      $region31: #{tpu_custom_call.1} parent=11 // pred_region
        _
      $region32: #{tpu_custom_call.1} parent=11 // pred_fallthru
        _
      // Predicated region
      $region33: #{tpu_custom_call.1} parent=11 // pred_check
        %p221 = pneg %p165
      $region34: #{tpu_custom_call.1} parent=11 // pred_check_branch
        %223 = sbr.rel (%p221) target = $region36
      $region35: #{tpu_custom_call.1} parent=11 // pred_region
        _
      $region36: #{tpu_custom_call.1} parent=11 // pred_fallthru
        _
    $region12: #{tpu_custom_call.1} parent=5 // pred_fallthru
      _
    %p224 = scmp.lt.s32.totalorder %s13, 2
    // Predicated region
    $region37: #{tpu_custom_call.1} parent=5 // pred_check
      %p225 = pneg %p224
    $region38: #{tpu_custom_call.1} parent=5 // pred_check_branch
      %227 = sbr.rel (%p225) target = $region40
    $region39: #{tpu_custom_call.1} parent=5 // pred_region
      // Predicated region
      $region41: #{tpu_custom_call.1} parent=39 // pred_check
        %p228 = pneg %p33
      $region42: #{tpu_custom_call.1} parent=39 // pred_check_branch
        %230 = sbr.rel (%p228) target = $region44
      $region43: #{tpu_custom_call.1} parent=39 // pred_region
        %p231 = scmp.lt.s32.totalorder %s13, 1
        %s232 = scalar_select %p231, %s13, 1
        %s233 = smul.addr %s232, 8
        %s234 = smul.addr %s233, 4
        %s235 = scalar_lea.vmem %s0, %s234
      $region44: #{tpu_custom_call.1} parent=39 // pred_fallthru
        _
    $region40: #{tpu_custom_call.1} parent=5 // pred_fallthru
      _
    %p236 = scmp.le.s32.totalorder 1, %s13
    %p237 = scmp.lt.s32.totalorder %s13, 3
    %p238 = pnand %p236, %p237
    %p239 = pneg %p238
    // Predicated region
    $region45: #{tpu_custom_call.1} parent=5 // pred_check
      _
    $region46: #{tpu_custom_call.1} parent=5 // pred_check_branch
      %241 = sbr.rel (%p238) target = $region48
    $region47: #{tpu_custom_call.1} parent=5 // pred_region
      %s242 = ssub.s32 %s13, 1
      %p243 = scmp.lt.s32.totalorder %s18, 1
      %s244 = scalar_select %p243, %s18, 1
      %s245 = smul.addr %s244, 8
      %s246 = smul.addr %s245, 4
      %s247 = scalar_lea.vmem %s0, %s246
      %p248 = pneg %p39
      %p249 = pneg %p36
      %p250 = pneg %p60
      %p251 = pneg %p57
      %p252 = pneg %p81
      %p253 = pneg %p78
      %p254 = pneg %p102
      %p255 = pneg %p99
      %p256 = pneg %p123
      %p257 = pneg %p120
      %p258 = pneg %p144
      %p259 = pneg %p141
      %p260 = pneg %p165
      %p261 = pneg %p162
      %p262 = pneg %p191
      %p263 = pneg %p188
      %p264 = scmp.lt.s32.totalorder %s18, 1
      %s265 = scalar_select %p264, %s18, 1
      %s266 = smul.addr %s265, 8
      %s267 = smul.addr %s266, 8
      %s268 = scalar_lea.vmem %s7, %s267
      %p269 = scmp.lt.s32.totalorder %s18, 1
      %s270 = scalar_select %p269, %s18, 1
      %s271 = smul.addr %s270, 8
      %s272 = smul.addr %s271, 4
      %s273 = scalar_lea.vmem %s0, %s272
      %p274 = scmp.lt.s32.totalorder %s18, 1
      %s275 = scalar_select %p274, %s18, 1
      %s276 = smul.addr %s275, 8
      %s277 = smul.addr %s276, 8
      %s278 = scalar_lea.vmem %s7, %s277
      %v282 = vld [vmem:[%s273] sm:$0xf]
      %v283 = vld [vmem:[%s273 + $0x4] sm:$0xf]
      %v284 = vld [vmem:[%s273 + $0x8] sm:$0xf]
      %v285 = vld [vmem:[%s273 + $0xc] sm:$0xf]
      %v286 = vld [vmem:[%s273 + $0x10] sm:$0xf]
      %v287 = vld [vmem:[%s273 + $0x14] sm:$0xf]
      %v288 = vld [vmem:[%s273 + $0x18] sm:$0xf]
      %v289 = vld [vmem:[%s273 + $0x1c] sm:$0xf]
      %v290 = vld [vmem:[%s1] sm:$0xf]
      %v291 = vld [vmem:[%s1 + $0x4] sm:$0xf]
      %v292 = vld [vmem:[%s1 + $0x8] sm:$0xf]
      %v293 = vld [vmem:[%s1 + $0xc] sm:$0xf]
      %v302 = vunpack.c.l.b16 %v282
      %v303 = vunpack.c.l.b16 %v283
      %v304 = vunpack.c.l.b16 %v284
      %v305 = vunpack.c.l.b16 %v285
      %v306 = vunpack.c.l.b16 %v286
      %v307 = vunpack.c.l.b16 %v287
      %v308 = vunpack.c.l.b16 %v288
      %v309 = vunpack.c.l.b16 %v289
      %v310 = vpack.c.b16 %v303, %v302
      %v311 = vpack.c.b16 %v305, %v304
      %v312 = vpack.c.b16 %v307, %v306
      %v313 = vpack.c.b16 %v309, %v308
      %v318 = vunpack.c.l.b16 %v290
      %v319 = vunpack.c.l.b16 %v291
      %v320 = vunpack.c.l.b16 %v292
      %v321 = vunpack.c.l.b16 %v293
      %v322 = vpack.c.b16 %v319, %v318
      %v323 = vpack.c.b16 %v321, %v320
      %vm326 = vcmask 261120
      %v328 = vsel %vm326, %v310, 0
      %v331 = vsel %vm326, %v311, 0
      %v334 = vsel %vm326, %v312, 0
      %v337 = vsel %vm326, %v313, 0
      %339 = vmatpush.bf16.msra.mxu0 0
      %340 = vmatpush.bf16.msra.mxu0 0
      %341 = vmatpush.bf16.msra.mxu0 0
      %342 = vmatpush.bf16.msra.mxu0 0
      %343 = vmatpush.bf16.msra.mxu0 0
      %344 = vmatpush.bf16.msra.mxu0 0
      %345 = vmatpush.bf16.msra.mxu0 %v323
      %346 = vmatpush.bf16.msra.mxu0 %v322
      %347 = vmatmul.bf16.gmra.mxu0 %v328
      %v348 = vpop.f32.mrf.mxu0
      %v349 = vadd.f32 0.0, %v348
      %v350 = vpop.f32.mrf.mxu0
      %v351 = vadd.f32 0.0, %v350
      %352 = vmatmul.bf16.gmra.mxu0 %v331
      %v353 = vpop.f32.mrf.mxu0
      %v354 = vadd.f32 0.0, %v353
      %v355 = vpop.f32.mrf.mxu0
      %v356 = vadd.f32 0.0, %v355
      %357 = vmatmul.bf16.gmra.mxu0 %v334
      %v358 = vpop.f32.mrf.mxu0
      %v359 = vadd.f32 0.0, %v358
      %v360 = vpop.f32.mrf.mxu0
      %v361 = vadd.f32 0.0, %v360
      %362 = vmatmul.bf16.gmra.mxu0 %v337
      %v363 = vpop.f32.mrf.mxu0
      %v364 = vadd.f32 0.0, %v363
      %v365 = vpop.f32.mrf.mxu0
      %v366 = vadd.f32 0.0, %v365
      %367 = vdwg.mxu0
      %v368 = vld [vmem:[%s4] sm:$0x1]
      %v369 = vperm.slane %v368, 0
      %v370 = vmul.f32 %v349, %v369
      %v371 = vmul.f32 %v351, %v369
      %v372 = vmul.f32 %v354, %v369
      %v373 = vmul.f32 %v356, %v369
      %v374 = vmul.f32 %v359, %v369
      %v375 = vmul.f32 %v361, %v369
      %v376 = vmul.f32 %v364, %v369
      %v377 = vmul.f32 %v366, %v369
      %v378 = vld [vmem:[%s4 + $0x1] sm:$0x1]
      %v379 = vperm.slane %v378, 0
      %v380 = vadd.f32 %v370, %v379
      %v381 = vadd.f32 %v371, %v379
      %v382 = vadd.f32 %v372, %v379
      %v383 = vadd.f32 %v373, %v379
      %v384 = vadd.f32 %v374, %v379
      %v385 = vadd.f32 %v375, %v379
      %v386 = vadd.f32 %v376, %v379
      %v387 = vadd.f32 %v377, %v379
      %v388 = vmax.f32 %v380, 0.0
      %v389 = vmax.f32 %v381, 0.0
      %v390 = vmax.f32 %v382, 0.0
      %v391 = vmax.f32 %v383, 0.0
      %v392 = vmax.f32 %v384, 0.0
      %v393 = vmax.f32 %v385, 0.0
      %v394 = vmax.f32 %v386, 0.0
      %v395 = vmax.f32 %v387, 0.0
      %vm396 = vcmask 60416
      %397 = vst.msk [vmem:[#allocation2] sm:$0xf] %vm396, 0
      %vm398 = vcmask 57344
      %vm399 = vsmask.f32 256
      %vm400 = vmand %vm398, %vm399
      %v401 = vld [vmem:[#allocation2 + $0x4] sm:$0x1]
      %v402 = vsel %vm400, 0, %v401
      %403 = vst [vmem:[#allocation2 + $0x4] sm:$0x1] %v402
      %v404 = vpack.c.bf16 %v388, %v388
      %v405 = vpack.c.bf16 %v389, %v389
      %v406 = vpack.c.bf16 %v390, %v390
      %v407 = vpack.c.bf16 %v391, %v391
      %v408 = vpack.c.bf16 %v392, %v392
      %v409 = vpack.c.bf16 %v393, %v393
      %v410 = vpack.c.bf16 %v394, %v394
      %v411 = vpack.c.bf16 %v395, %v395
      %vm412 = vsmask.f32 4368
      %vm413 = vmor %vm399, %vm412
      %v415 = vshrl.u32 %v404, 16
      %v417 = vrot.slane %v415, 7
      %v418 = vshll.u32 %v404, 16
      %v420 = vor.u32 %v417, %v418
      %v421 = vrot.slane %v417, 4
      %v423 = vshrl.u32 %v405, 16
      %v425 = vrot.slane %v423, 7
      %v426 = vshll.u32 %v405, 16
      %v428 = vor.u32 %v425, %v426
      %v429 = vsel %vm413, %v421, %v428
      %v430 = vrot.slane %v425, 4
      %v432 = vshrl.u32 %v406, 16
      %v434 = vrot.slane %v432, 7
      %v435 = vshll.u32 %v406, 16
      %v437 = vor.u32 %v434, %v435
      %v438 = vsel %vm413, %v430, %v437
      %v439 = vrot.slane %v434, 4
      %v441 = vshrl.u32 %v407, 16
      %v443 = vrot.slane %v441, 7
      %v444 = vshll.u32 %v407, 16
      %v446 = vor.u32 %v443, %v444
      %v447 = vsel %vm413, %v439, %v446
      %v448 = vrot.slane %v443, 4
      %v450 = vshrl.u32 %v408, 16
      %v452 = vrot.slane %v450, 7
      %v453 = vshll.u32 %v408, 16
      %v455 = vor.u32 %v452, %v453
      %v456 = vsel %vm413, %v448, %v455
      %v457 = vrot.slane %v452, 4
      %v459 = vshrl.u32 %v409, 16
      %v461 = vrot.slane %v459, 7
      %v462 = vshll.u32 %v409, 16
      %v464 = vor.u32 %v461, %v462
      %v465 = vsel %vm413, %v457, %v464
      %v466 = vrot.slane %v461, 4
      %v468 = vshrl.u32 %v410, 16
      %v470 = vrot.slane %v468, 7
      %v471 = vshll.u32 %v410, 16
      %v473 = vor.u32 %v470, %v471
      %v474 = vsel %vm413, %v466, %v473
      %v475 = vrot.slane %v470, 4
      %v477 = vshrl.u32 %v411, 16
      %v479 = vrot.slane %v477, 7
      %v480 = vshll.u32 %v411, 16
      %v482 = vor.u32 %v479, %v480
      %v483 = vsel %vm413, %v475, %v482
      %v484 = vrot.slane %v479, 4
      %vm494 = vcmask 60416
      %vm495 = vsmask.f32 7938
      %vm496 = vmand %vm494, %vm495
      %v497 = vld [vmem:[#allocation2 + $0x4] sm:$0xf]
      %v498 = vsel %vm496, %v420, %v497
      %499 = vst [vmem:[#allocation2 + $0x4] sm:$0xf] %v498
      %500 = vst.msk [vmem:[#allocation2 + $0x8] sm:$0xf] %vm396, %v429
      %501 = vst.msk [vmem:[#allocation2 + $0xc] sm:$0xf] %vm396, %v438
      %502 = vst.msk [vmem:[#allocation2 + $0x10] sm:$0xf] %vm396, %v447
      %503 = vst.msk [vmem:[#allocation2 + $0x14] sm:$0xf] %vm396, %v456
      %504 = vst.msk [vmem:[#allocation2 + $0x18] sm:$0xf] %vm396, %v465
      %505 = vst.msk [vmem:[#allocation2 + $0x1c] sm:$0xf] %vm396, %v474
      %506 = vst.msk [vmem:[#allocation2 + $0x20] sm:$0xf] %vm396, %v483
      %v507 = vld [vmem:[#allocation2 + $0x24] sm:$0x1]
      %v508 = vsel %vm400, %v484, %v507
      %509 = vst [vmem:[#allocation2 + $0x24] sm:$0x1] %v508
      %v510 = vld [vmem:[#allocation2 + $0x24] sm:$0xf]
      %v511 = vsel %vm496, 0, %v510
      %512 = vst [vmem:[#allocation2 + $0x24] sm:$0xf] %v511
      %vm513 = vcmask 57344
      %514 = vst.msk [vmem:[#allocation2 + $0x28] sm:$0x1] %vm513, 0
      %v515 = vlaneseq
      %v516 = vshrl.u32 %v515, 7
      %v517 = vadd.s32 %v516, 8
      %v518 = vadd.s32 %v516, 16
      %v519 = vadd.s32 %v516, 24
      %v520 = vadd.s32 %v516, 32
      %v521 = vadd.s32 %v516, 40
      %v522 = vadd.s32 %v516, 48
      %v523 = vadd.s32 %v516, 56
      %vm524 = vcmp.lt.s32.totalorder %v516, 0
      %v525 = vsub.s32 0, %v516
      %v526 = vsel %vm524, %v525, %v516
      %v527 = vshrl.u32 %v526, 3
      %v528 = vand.u32 %v526, 7
      %v529 = vsub.s32 0, %v528
      %v530 = vsel %vm524, %v529, %v528
      %vm531 = vcmp.lt.s32.totalorder %v517, 0
      %v532 = vsub.s32 0, %v517
      %v533 = vsel %vm531, %v532, %v517
      %v534 = vshrl.u32 %v533, 3
      %v535 = vand.u32 %v533, 7
      %v536 = vsub.s32 0, %v535
      %v537 = vsel %vm531, %v536, %v535
      %vm538 = vcmp.lt.s32.totalorder %v518, 0
      %v539 = vsub.s32 0, %v518
      %v540 = vsel %vm538, %v539, %v518
      %v541 = vshrl.u32 %v540, 3
      %v542 = vand.u32 %v540, 7
      %v543 = vsub.s32 0, %v542
      %v544 = vsel %vm538, %v543, %v542
      %vm545 = vcmp.lt.s32.totalorder %v519, 0
      %v546 = vsub.s32 0, %v519
      %v547 = vsel %vm545, %v546, %v519
      %v548 = vshrl.u32 %v547, 3
      %v549 = vand.u32 %v547, 7
      %v550 = vsub.s32 0, %v549
      %v551 = vsel %vm545, %v550, %v549
      %vm552 = vcmp.lt.s32.totalorder %v520, 0
      %v553 = vsub.s32 0, %v520
      %v554 = vsel %vm552, %v553, %v520
      %v555 = vshrl.u32 %v554, 3
      %v556 = vand.u32 %v554, 7
      %v557 = vsub.s32 0, %v556
      %v558 = vsel %vm552, %v557, %v556
      %vm559 = vcmp.lt.s32.totalorder %v521, 0
      %v560 = vsub.s32 0, %v521
      %v561 = vsel %vm559, %v560, %v521
      %v562 = vshrl.u32 %v561, 3
      %v563 = vand.u32 %v561, 7
      %v564 = vsub.s32 0, %v563
      %v565 = vsel %vm559, %v564, %v563
      %vm566 = vcmp.lt.s32.totalorder %v522, 0
      %v567 = vsub.s32 0, %v522
      %v568 = vsel %vm566, %v567, %v522
      %v569 = vshrl.u32 %v568, 3
      %v570 = vand.u32 %v568, 7
      %v571 = vsub.s32 0, %v570
      %v572 = vsel %vm566, %v571, %v570
      %vm573 = vcmp.lt.s32.totalorder %v523, 0
      %v574 = vsub.s32 0, %v523
      %v575 = vsel %vm573, %v574, %v523
      %v576 = vshrl.u32 %v575, 3
      %v577 = vand.u32 %v575, 7
      %v578 = vsub.s32 0, %v577
      %v579 = vsel %vm573, %v578, %v577
      %vm580 = vcmp.ne.s32.totalorder %v530, 0
      %vm581 = vcmp.ne.s32.totalorder %v537, 0
      %vm582 = vcmp.ne.s32.totalorder %v544, 0
      %vm583 = vcmp.ne.s32.totalorder %v551, 0
      %vm584 = vcmp.ne.s32.totalorder %v558, 0
      %vm585 = vcmp.ne.s32.totalorder %v565, 0
      %vm586 = vcmp.ne.s32.totalorder %v572, 0
      %vm587 = vcmp.ne.s32.totalorder %v579, 0
      %vm588 = vcmp.lt.s32.totalorder %v530, 0
      %vm589 = vcmp.lt.s32.totalorder %v537, 0
      %vm590 = vcmp.lt.s32.totalorder %v544, 0
      %vm591 = vcmp.lt.s32.totalorder %v551, 0
      %vm592 = vcmp.lt.s32.totalorder %v558, 0
      %vm593 = vcmp.lt.s32.totalorder %v565, 0
      %vm594 = vcmp.lt.s32.totalorder %v572, 0
      %vm595 = vcmp.lt.s32.totalorder %v579, 0
      %vm596 = vmand %vm588, %vm580
      %vm597 = vmand %vm589, %vm581
      %vm598 = vmand %vm590, %vm582
      %vm599 = vmand %vm591, %vm583
      %vm600 = vmand %vm592, %vm584
      %vm601 = vmand %vm593, %vm585
      %vm602 = vmand %vm594, %vm586
      %vm603 = vmand %vm595, %vm587
      %v604 = vadd.s32 %v530, 8
      %v605 = vadd.s32 %v537, 8
      %v606 = vadd.s32 %v544, 8
      %v607 = vadd.s32 %v551, 8
      %v608 = vadd.s32 %v558, 8
      %v609 = vadd.s32 %v565, 8
      %v610 = vadd.s32 %v572, 8
      %v611 = vadd.s32 %v579, 8
      %v612 = vsel %vm596, %v604, %v530
      %v613 = vsel %vm597, %v605, %v537
      %v614 = vsel %vm598, %v606, %v544
      %v615 = vsel %vm599, %v607, %v551
      %v616 = vsel %vm600, %v608, %v558
      %v617 = vsel %vm601, %v609, %v565
      %v618 = vsel %vm602, %v610, %v572
      %v619 = vsel %vm603, %v611, %v579
      %vm620 = vcmp.ge.s32.totalorder %v612, 1
      %vm621 = vcmp.ge.s32.totalorder %v613, 1
      %vm622 = vcmp.ge.s32.totalorder %v614, 1
      %vm623 = vcmp.ge.s32.totalorder %v615, 1
      %vm624 = vcmp.ge.s32.totalorder %v616, 1
      %vm625 = vcmp.ge.s32.totalorder %v617, 1
      %vm626 = vcmp.ge.s32.totalorder %v618, 1
      %vm627 = vcmp.ge.s32.totalorder %v619, 1
      %vm628 = vcmp.le.s32.totalorder %v612, 6
      %vm629 = vcmp.le.s32.totalorder %v613, 6
      %vm630 = vcmp.le.s32.totalorder %v614, 6
      %vm631 = vcmp.le.s32.totalorder %v615, 6
      %vm632 = vcmp.le.s32.totalorder %v616, 6
      %vm633 = vcmp.le.s32.totalorder %v617, 6
      %vm634 = vcmp.le.s32.totalorder %v618, 6
      %vm635 = vcmp.le.s32.totalorder %v619, 6
      %v636 = vld [vmem:[#allocation2] sm:$0xf]
      %v637 = vld [vmem:[#allocation2 + $0x4] sm:$0xf]
      %v638 = vld [vmem:[#allocation2 + $0x8] sm:$0xf]
      %v639 = vld [vmem:[#allocation2 + $0xc] sm:$0xf]
      %v640 = vld [vmem:[#allocation2 + $0x10] sm:$0xf]
      %v641 = vld [vmem:[#allocation2 + $0x14] sm:$0xf]
      %v642 = vld [vmem:[#allocation2 + $0x18] sm:$0xf]
      %v643 = vld [vmem:[#allocation2 + $0x1c] sm:$0xf]
      %v644 = vsel %vm620, 1, 0
      %v645 = vsel %vm621, 1, 0
      %v646 = vsel %vm622, 1, 0
      %v647 = vsel %vm623, 1, 0
      %v648 = vsel %vm624, 1, 0
      %v649 = vsel %vm625, 1, 0
      %v650 = vsel %vm626, 1, 0
      %v651 = vsel %vm627, 1, 0
      %vm652 = vcmp.eq.s32.totalorder %v644, 1
      %vm653 = vcmp.eq.s32.totalorder %v645, 1
      %vm654 = vcmp.eq.s32.totalorder %v646, 1
      %vm655 = vcmp.eq.s32.totalorder %v647, 1
      %vm656 = vcmp.eq.s32.totalorder %v648, 1
      %vm657 = vcmp.eq.s32.totalorder %v649, 1
      %vm658 = vcmp.eq.s32.totalorder %v650, 1
      %vm659 = vcmp.eq.s32.totalorder %v651, 1
      %vm660 = vmpackc.low %vm652, %vm652
      %vm661 = vmpackc.low %vm653, %vm653
      %vm662 = vmpackc.low %vm654, %vm654
      %vm663 = vmpackc.low %vm655, %vm655
      %vm664 = vmpackc.low %vm656, %vm656
      %vm665 = vmpackc.low %vm657, %vm657
      %vm666 = vmpackc.low %vm658, %vm658
      %vm667 = vmpackc.low %vm659, %vm659
      %v668 = vsel %vm660, %v636, 0
      %v669 = vsel %vm661, %v637, 0
      %v670 = vsel %vm662, %v638, 0
      %v671 = vsel %vm663, %v639, 0
      %v672 = vsel %vm664, %v640, 0
      %v673 = vsel %vm665, %v641, 0
      %v674 = vsel %vm666, %v642, 0
      %v675 = vsel %vm667, %v643, 0
      %676 = vst.msk [vmem:[#allocation3] sm:$0xf] %vm396, %v668
      %677 = vst.msk [vmem:[#allocation3 + $0x4] sm:$0xf] %vm396, %v669
      %678 = vst.msk [vmem:[#allocation3 + $0x8] sm:$0xf] %vm396, %v670
      %679 = vst.msk [vmem:[#allocation3 + $0xc] sm:$0xf] %vm396, %v671
      %680 = vst.msk [vmem:[#allocation3 + $0x10] sm:$0xf] %vm396, %v672
      %681 = vst.msk [vmem:[#allocation3 + $0x14] sm:$0xf] %vm396, %v673
      %682 = vst.msk [vmem:[#allocation3 + $0x18] sm:$0xf] %vm396, %v674
      %683 = vst.msk [vmem:[#allocation3 + $0x1c] sm:$0xf] %vm396, %v675
      %v684 = vld [vmem:[#allocation2] sm:$0xf]
      %v685 = vld [vmem:[#allocation2 + $0x4] sm:$0xf]
      %v686 = vld [vmem:[#allocation2 + $0x8] sm:$0xf]
      %v687 = vld [vmem:[#allocation2 + $0xc] sm:$0xf]
      %v688 = vld [vmem:[#allocation2 + $0x10] sm:$0xf]
      %v689 = vld [vmem:[#allocation2 + $0x14] sm:$0xf]
      %v690 = vld [vmem:[#allocation2 + $0x18] sm:$0xf]
      %v691 = vld [vmem:[#allocation2 + $0x1c] sm:$0xf]
      %v692 = vld [vmem:[#allocation2 + $0x20] sm:$0x1]
      %vm693 = vsmask.f32 3328
      %vm694 = vsmask.f32 7440
      %vm695 = vmor %vm693, %vm694
      %v697 = vshrl.u32 %v684, 16
      %v699 = vrot.slane %v697, 4
      %v700 = vshll.u32 %v684, 16
      %v702 = vrot.slane %v700, 5
      %v703 = vor.u32 %v699, %v702
      %v704 = vrot.slane %v703, 4
      %v706 = vshll.u32 %v685, 16
      %v708 = vrot.slane %v706, 5
      %v709 = vsel %vm695, %v704, %v708
      %v710 = vshrl.u32 %v685, 16
      %v712 = vrot.slane %v710, 4
      %v713 = vor.u32 %v712, %v708
      %v714 = vrot.slane %v713, 4
      %v716 = vshll.u32 %v686, 16
      %v718 = vrot.slane %v716, 5
      %v719 = vsel %vm695, %v714, %v718
      %v720 = vshrl.u32 %v686, 16
      %v722 = vrot.slane %v720, 4
      %v723 = vor.u32 %v722, %v718
      %v724 = vrot.slane %v723, 4
      %v726 = vshll.u32 %v687, 16
      %v728 = vrot.slane %v726, 5
      %v729 = vsel %vm695, %v724, %v728
      %v730 = vshrl.u32 %v687, 16
      %v732 = vrot.slane %v730, 4
      %v733 = vor.u32 %v732, %v728
      %v734 = vrot.slane %v733, 4
      %v736 = vshll.u32 %v688, 16
      %v738 = vrot.slane %v736, 5
      %v739 = vsel %vm695, %v734, %v738
      %v740 = vshrl.u32 %v688, 16
      %v742 = vrot.slane %v740, 4
      %v743 = vor.u32 %v742, %v738
      %v744 = vrot.slane %v743, 4
      %v746 = vshll.u32 %v689, 16
      %v748 = vrot.slane %v746, 5
      %v749 = vsel %vm695, %v744, %v748
      %v750 = vshrl.u32 %v689, 16
      %v752 = vrot.slane %v750, 4
      %v753 = vor.u32 %v752, %v748
      %v754 = vrot.slane %v753, 4
      %v756 = vshll.u32 %v690, 16
      %v758 = vrot.slane %v756, 5
      %v759 = vsel %vm695, %v754, %v758
      %v760 = vshrl.u32 %v690, 16
      %v762 = vrot.slane %v760, 4
      %v763 = vor.u32 %v762, %v758
      %v764 = vrot.slane %v763, 4
      %v766 = vshll.u32 %v691, 16
      %v768 = vrot.slane %v766, 5
      %v769 = vsel %vm695, %v764, %v768
      %v770 = vshrl.u32 %v691, 16
      %v772 = vrot.slane %v770, 4
      %v773 = vor.u32 %v772, %v768
      %v774 = vrot.slane %v773, 4
      %v776 = vshll.u32 %v692, 16
      %v778 = vrot.slane %v776, 5
      %v779 = vsel %vm695, %v774, %v778
      %780 = vrot.lane.b32.xlu0 %v709, 8
      %v781 = vpop.permute.xlu0 %780
      %782 = vrot.lane.b32.xlu0 %v719, 8
      %v783 = vpop.permute.xlu0 %782
      %784 = vrot.lane.b32.xlu0 %v729, 8
      %v785 = vpop.permute.xlu0 %784
      %786 = vrot.lane.b32.xlu0 %v739, 8
      %v787 = vpop.permute.xlu0 %786
      %788 = vrot.lane.b32.xlu0 %v749, 8
      %v789 = vpop.permute.xlu0 %788
      %790 = vrot.lane.b32.xlu0 %v759, 8
      %v791 = vpop.permute.xlu0 %790
      %792 = vrot.lane.b32.xlu0 %v769, 8
      %v793 = vpop.permute.xlu0 %792
      %794 = vrot.lane.b32.xlu0 %v779, 8
      %v795 = vpop.permute.xlu0 %794
      %vm804 = vcmask 126016
      %805 = vst.msk [vmem:[#allocation3] sm:$0xf] %vm804, %v781
      %806 = vst.msk [vmem:[#allocation3 + $0x4] sm:$0xf] %vm804, %v783
      %807 = vst.msk [vmem:[#allocation3 + $0x8] sm:$0xf] %vm804, %v785
      %808 = vst.msk [vmem:[#allocation3 + $0xc] sm:$0xf] %vm804, %v787
      %809 = vst.msk [vmem:[#allocation3 + $0x10] sm:$0xf] %vm804, %v789
      %810 = vst.msk [vmem:[#allocation3 + $0x14] sm:$0xf] %vm804, %v791
      %811 = vst.msk [vmem:[#allocation3 + $0x18] sm:$0xf] %vm804, %v793
      %812 = vst.msk [vmem:[#allocation3 + $0x1c] sm:$0xf] %vm804, %v795
      %v813 = vld [vmem:[#allocation2] sm:$0xe]
      %v814 = vld [vmem:[#allocation2 + $0x4] sm:$0xf]
      %v815 = vld [vmem:[#allocation2 + $0x8] sm:$0xf]
      %v816 = vld [vmem:[#allocation2 + $0xc] sm:$0xf]
      %v817 = vld [vmem:[#allocation2 + $0x10] sm:$0xf]
      %v818 = vld [vmem:[#allocation2 + $0x14] sm:$0xf]
      %v819 = vld [vmem:[#allocation2 + $0x18] sm:$0xf]
      %v820 = vld [vmem:[#allocation2 + $0x1c] sm:$0xf]
      %v821 = vld [vmem:[#allocation2 + $0x20] sm:$0x1]
      %v822 = vsel %vm628, 1, 0
      %v823 = vsel %vm629, 1, 0
      %v824 = vsel %vm630, 1, 0
      %v825 = vsel %vm631, 1, 0
      %v826 = vsel %vm632, 1, 0
      %v827 = vsel %vm633, 1, 0
      %v828 = vsel %vm634, 1, 0
      %v829 = vsel %vm635, 1, 0
      %vm830 = vcmp.eq.s32.totalorder %v822, 1
      %vm831 = vcmp.eq.s32.totalorder %v823, 1
      %vm832 = vcmp.eq.s32.totalorder %v824, 1
      %vm833 = vcmp.eq.s32.totalorder %v825, 1
      %vm834 = vcmp.eq.s32.totalorder %v826, 1
      %vm835 = vcmp.eq.s32.totalorder %v827, 1
      %vm836 = vcmp.eq.s32.totalorder %v828, 1
      %vm837 = vcmp.eq.s32.totalorder %v829, 1
      %vm838 = vmpackc.low %vm830, %vm830
      %vm839 = vmpackc.low %vm831, %vm831
      %vm840 = vmpackc.low %vm832, %vm832
      %vm841 = vmpackc.low %vm833, %vm833
      %vm842 = vmpackc.low %vm834, %vm834
      %vm843 = vmpackc.low %vm835, %vm835
      %vm844 = vmpackc.low %vm836, %vm836
      %vm845 = vmpackc.low %vm837, %vm837
      %v846 = vsel %vm838, 65537, 0
      %v847 = vsel %vm839, 65537, 0
      %v848 = vsel %vm840, 65537, 0
      %v849 = vsel %vm841, 65537, 0
      %v850 = vsel %vm842, 65537, 0
      %v851 = vsel %vm843, 65537, 0
      %v852 = vsel %vm844, 65537, 0
      %v853 = vsel %vm845, 65537, 0
      %vm854 = vcmask 1040384
      %vm855 = vcmask 1044484
      %vm856 = vmor %vm854, %vm855
      %v857 = vrot.slane %v846, 7
      %v858 = vrot.slane %v857, 4
      %v859 = vrot.slane %v847, 7
      %v860 = vsel %vm856, %v858, %v859
      %v861 = vrot.slane %v859, 4
      %v862 = vrot.slane %v848, 7
      %v863 = vsel %vm856, %v861, %v862
      %v864 = vrot.slane %v862, 4
      %v865 = vrot.slane %v849, 7
      %v866 = vsel %vm856, %v864, %v865
      %v867 = vrot.slane %v865, 4
      %v868 = vrot.slane %v850, 7
      %v869 = vsel %vm856, %v867, %v868
      %v870 = vrot.slane %v868, 4
      %v871 = vrot.slane %v851, 7
      %v872 = vsel %vm856, %v870, %v871
      %v873 = vrot.slane %v871, 4
      %v874 = vrot.slane %v852, 7
      %v875 = vsel %vm856, %v873, %v874
      %v876 = vrot.slane %v874, 4
      %v877 = vrot.slane %v853, 7
      %v878 = vsel %vm856, %v876, %v877
      %v879 = vrot.slane %v877, 4
      %v880 = vunpack.c.l.b16 %v857
      %v881 = vunpack.c.h.b16 %v857
      %v882 = vunpack.c.l.b16 0
      %v883 = vunpack.c.h.b16 0
      %vm884 = vcmp.ne.s32.totalorder %v880, %v882
      %vm885 = vcmp.ne.s32.totalorder %v881, %v883
      %vm886 = vmpackc.low %vm885, %vm884
      %v887 = vunpack.c.l.b16 %v860
      %v888 = vunpack.c.h.b16 %v860
      %v889 = vunpack.c.l.b16 0
      %v890 = vunpack.c.h.b16 0
      %vm891 = vcmp.ne.s32.totalorder %v887, %v889
      %vm892 = vcmp.ne.s32.totalorder %v888, %v890
      %vm893 = vmpackc.low %vm892, %vm891
      %v894 = vunpack.c.l.b16 %v863
      %v895 = vunpack.c.h.b16 %v863
      %v896 = vunpack.c.l.b16 0
      %v897 = vunpack.c.h.b16 0
      %vm898 = vcmp.ne.s32.totalorder %v894, %v896
      %vm899 = vcmp.ne.s32.totalorder %v895, %v897
      %vm900 = vmpackc.low %vm899, %vm898
      %v901 = vunpack.c.l.b16 %v866
      %v902 = vunpack.c.h.b16 %v866
      %v903 = vunpack.c.l.b16 0
      %v904 = vunpack.c.h.b16 0
      %vm905 = vcmp.ne.s32.totalorder %v901, %v903
      %vm906 = vcmp.ne.s32.totalorder %v902, %v904
      %vm907 = vmpackc.low %vm906, %vm905
      %v908 = vunpack.c.l.b16 %v869
      %v909 = vunpack.c.h.b16 %v869
      %v910 = vunpack.c.l.b16 0
      %v911 = vunpack.c.h.b16 0
      %vm912 = vcmp.ne.s32.totalorder %v908, %v910
      %vm913 = vcmp.ne.s32.totalorder %v909, %v911
      %vm914 = vmpackc.low %vm913, %vm912
      %v915 = vunpack.c.l.b16 %v872
      %v916 = vunpack.c.h.b16 %v872
      %v917 = vunpack.c.l.b16 0
      %v918 = vunpack.c.h.b16 0
      %vm919 = vcmp.ne.s32.totalorder %v915, %v917
      %vm920 = vcmp.ne.s32.totalorder %v916, %v918
      %vm921 = vmpackc.low %vm920, %vm919
      %v922 = vunpack.c.l.b16 %v875
      %v923 = vunpack.c.h.b16 %v875
      %v924 = vunpack.c.l.b16 0
      %v925 = vunpack.c.h.b16 0
      %vm926 = vcmp.ne.s32.totalorder %v922, %v924
      %vm927 = vcmp.ne.s32.totalorder %v923, %v925
      %vm928 = vmpackc.low %vm927, %vm926
      %v929 = vunpack.c.l.b16 %v878
      %v930 = vunpack.c.h.b16 %v878
      %v931 = vunpack.c.l.b16 0
      %v932 = vunpack.c.h.b16 0
      %vm933 = vcmp.ne.s32.totalorder %v929, %v931
      %vm934 = vcmp.ne.s32.totalorder %v930, %v932
      %vm935 = vmpackc.low %vm934, %vm933
      %v936 = vunpack.c.l.b16 %v879
      %v937 = vunpack.c.h.b16 %v879
      %v938 = vunpack.c.l.b16 0
      %v939 = vunpack.c.h.b16 0
      %vm940 = vcmp.ne.s32.totalorder %v936, %v938
      %vm941 = vcmp.ne.s32.totalorder %v937, %v939
      %vm942 = vmpackc.low %vm941, %vm940
      %v943 = vsel %vm886, %v813, 0
      %v944 = vsel %vm893, %v814, 0
      %v945 = vsel %vm900, %v815, 0
      %v946 = vsel %vm907, %v816, 0
      %v947 = vsel %vm914, %v817, 0
      %v948 = vsel %vm921, %v818, 0
      %v949 = vsel %vm928, %v819, 0
      %v950 = vsel %vm935, %v820, 0
      %v951 = vsel %vm942, %v821, 0
      %vm961 = vcmask 1042432
      %vm962 = vcmask 1046532
      %vm963 = vmor %vm961, %vm962
      %v964 = vrot.slane %v943, 5
      %v965 = vrot.slane %v964, 4
      %v966 = vrot.slane %v944, 5
      %v967 = vsel %vm963, %v965, %v966
      %v968 = vrot.slane %v966, 4
      %v969 = vrot.slane %v945, 5
      %v970 = vsel %vm963, %v968, %v969
      %v971 = vrot.slane %v969, 4
      %v972 = vrot.slane %v946, 5
      %v973 = vsel %vm963, %v971, %v972
      %v974 = vrot.slane %v972, 4
      %v975 = vrot.slane %v947, 5
      %v976 = vsel %vm963, %v974, %v975
      %v977 = vrot.slane %v975, 4
      %v978 = vrot.slane %v948, 5
      %v979 = vsel %vm963, %v977, %v978
      %v980 = vrot.slane %v978, 4
      %v981 = vrot.slane %v949, 5
      %v982 = vsel %vm963, %v980, %v981
      %v983 = vrot.slane %v981, 4
      %v984 = vrot.slane %v950, 5
      %v985 = vsel %vm963, %v983, %v984
      %v986 = vrot.slane %v984, 4
      %v987 = vrot.slane %v951, 5
      %v988 = vsel %vm963, %v986, %v987
      %989 = vrot.lane.b32.xlu0 %v967, 16
      %v990 = vpop.permute.xlu0 %989
      %991 = vrot.lane.b32.xlu0 %v970, 16
      %v992 = vpop.permute.xlu0 %991
      %993 = vrot.lane.b32.xlu0 %v973, 16
      %v994 = vpop.permute.xlu0 %993
      %995 = vrot.lane.b32.xlu0 %v976, 16
      %v996 = vpop.permute.xlu0 %995
      %997 = vrot.lane.b32.xlu0 %v979, 16
      %v998 = vpop.permute.xlu0 %997
      %999 = vrot.lane.b32.xlu0 %v982, 16
      %v1000 = vpop.permute.xlu0 %999
      %1001 = vrot.lane.b32.xlu0 %v985, 16
      %v1002 = vpop.permute.xlu0 %1001
      %1003 = vrot.lane.b32.xlu0 %v988, 16
      %v1004 = vpop.permute.xlu0 %1003
      %vm1013 = vcmask 191616
      %1014 = vst.msk [vmem:[#allocation3] sm:$0xf] %vm1013, %v990
      %1015 = vst.msk [vmem:[#allocation3 + $0x4] sm:$0xf] %vm1013, %v992
      %1016 = vst.msk [vmem:[#allocation3 + $0x8] sm:$0xf] %vm1013, %v994
      %1017 = vst.msk [vmem:[#allocation3 + $0xc] sm:$0xf] %vm1013, %v996
      %1018 = vst.msk [vmem:[#allocation3 + $0x10] sm:$0xf] %vm1013, %v998
      %1019 = vst.msk [vmem:[#allocation3 + $0x14] sm:$0xf] %vm1013, %v1000
      %1020 = vst.msk [vmem:[#allocation3 + $0x18] sm:$0xf] %vm1013, %v1002
      %1021 = vst.msk [vmem:[#allocation3 + $0x1c] sm:$0xf] %vm1013, %v1004
      %v1022 = vld [vmem:[#allocation2 + $0x4] sm:$0xf]
      %v1023 = vld [vmem:[#allocation2 + $0x8] sm:$0xf]
      %v1024 = vld [vmem:[#allocation2 + $0xc] sm:$0xf]
      %v1025 = vld [vmem:[#allocation2 + $0x10] sm:$0xf]
      %v1026 = vld [vmem:[#allocation2 + $0x14] sm:$0xf]
      %v1027 = vld [vmem:[#allocation2 + $0x18] sm:$0xf]
      %v1028 = vld [vmem:[#allocation2 + $0x1c] sm:$0xf]
      %v1029 = vld [vmem:[#allocation2 + $0x20] sm:$0xf]
      %v1030 = vsel %vm660, %v1022, 0
      %v1031 = vsel %vm661, %v1023, 0
      %v1032 = vsel %vm662, %v1024, 0
      %v1033 = vsel %vm663, %v1025, 0
      %v1034 = vsel %vm664, %v1026, 0
      %v1035 = vsel %vm665, %v1027, 0
      %v1036 = vsel %vm666, %v1028, 0
      %v1037 = vsel %vm667, %v1029, 0
      %1046 = vrot.lane.b32.xlu0 %v1030, 24
      %v1047 = vpop.permute.xlu0 %1046
      %1048 = vrot.lane.b32.xlu0 %v1031, 24
      %v1049 = vpop.permute.xlu0 %1048
      %1050 = vrot.lane.b32.xlu0 %v1032, 24
      %v1051 = vpop.permute.xlu0 %1050
      %1052 = vrot.lane.b32.xlu0 %v1033, 24
      %v1053 = vpop.permute.xlu0 %1052
      %1054 = vrot.lane.b32.xlu0 %v1034, 24
      %v1055 = vpop.permute.xlu0 %1054
      %1056 = vrot.lane.b32.xlu0 %v1035, 24
      %v1057 = vpop.permute.xlu0 %1056
      %1058 = vrot.lane.b32.xlu0 %v1036, 24
      %v1059 = vpop.permute.xlu0 %1058
      %1060 = vrot.lane.b32.xlu0 %v1037, 24
      %v1061 = vpop.permute.xlu0 %1060
      %vm1070 = vcmask 257216
      %1071 = vst.msk [vmem:[#allocation3] sm:$0xf] %vm1070, %v1047
      %1072 = vst.msk [vmem:[#allocation3 + $0x4] sm:$0xf] %vm1070, %v1049
      %1073 = vst.msk [vmem:[#allocation3 + $0x8] sm:$0xf] %vm1070, %v1051
      %1074 = vst.msk [vmem:[#allocation3 + $0xc] sm:$0xf] %vm1070, %v1053
      %1075 = vst.msk [vmem:[#allocation3 + $0x10] sm:$0xf] %vm1070, %v1055
      %1076 = vst.msk [vmem:[#allocation3 + $0x14] sm:$0xf] %vm1070, %v1057
      %1077 = vst.msk [vmem:[#allocation3 + $0x18] sm:$0xf] %vm1070, %v1059
      %1078 = vst.msk [vmem:[#allocation3 + $0x1c] sm:$0xf] %vm1070, %v1061
      %v1079 = vld [vmem:[#allocation2 + $0x4] sm:$0xf]
      %v1080 = vld [vmem:[#allocation2 + $0x8] sm:$0xf]
      %v1081 = vld [vmem:[#allocation2 + $0xc] sm:$0xf]
      %v1082 = vld [vmem:[#allocation2 + $0x10] sm:$0xf]
      %v1083 = vld [vmem:[#allocation2 + $0x14] sm:$0xf]
      %v1084 = vld [vmem:[#allocation2 + $0x18] sm:$0xf]
      %v1085 = vld [vmem:[#allocation2 + $0x1c] sm:$0xf]
      %v1086 = vld [vmem:[#allocation2 + $0x20] sm:$0xf]
      %v1087 = vld [vmem:[#allocation2 + $0x24] sm:$0x1]
      %v1089 = vshrl.u32 %v1079, 16
      %v1091 = vrot.slane %v1089, 4
      %v1092 = vshll.u32 %v1079, 16
      %v1094 = vrot.slane %v1092, 5
      %v1095 = vor.u32 %v1091, %v1094
      %v1096 = vrot.slane %v1095, 4
      %v1098 = vshll.u32 %v1080, 16
      %v1100 = vrot.slane %v1098, 5
      %v1101 = vsel %vm695, %v1096, %v1100
      %v1102 = vshrl.u32 %v1080, 16
      %v1104 = vrot.slane %v1102, 4
      %v1105 = vor.u32 %v1104, %v1100
      %v1106 = vrot.slane %v1105, 4
      %v1108 = vshll.u32 %v1081, 16
      %v1110 = vrot.slane %v1108, 5
      %v1111 = vsel %vm695, %v1106, %v1110
      %v1112 = vshrl.u32 %v1081, 16
      %v1114 = vrot.slane %v1112, 4
      %v1115 = vor.u32 %v1114, %v1110
      %v1116 = vrot.slane %v1115, 4
      %v1118 = vshll.u32 %v1082, 16
      %v1120 = vrot.slane %v1118, 5
      %v1121 = vsel %vm695, %v1116, %v1120
      %v1122 = vshrl.u32 %v1082, 16
      %v1124 = vrot.slane %v1122, 4
      %v1125 = vor.u32 %v1124, %v1120
      %v1126 = vrot.slane %v1125, 4
      %v1128 = vshll.u32 %v1083, 16
      %v1130 = vrot.slane %v1128, 5
      %v1131 = vsel %vm695, %v1126, %v1130
      %v1132 = vshrl.u32 %v1083, 16
      %v1134 = vrot.slane %v1132, 4
      %v1135 = vor.u32 %v1134, %v1130
      %v1136 = vrot.slane %v1135, 4
      %v1138 = vshll.u32 %v1084, 16
      %v1140 = vrot.slane %v1138, 5
      %v1141 = vsel %vm695, %v1136, %v1140
      %v1142 = vshrl.u32 %v1084, 16
      %v1144 = vrot.slane %v1142, 4
      %v1145 = vor.u32 %v1144, %v1140
      %v1146 = vrot.slane %v1145, 4
      %v1148 = vshll.u32 %v1085, 16
      %v1150 = vrot.slane %v1148, 5
      %v1151 = vsel %vm695, %v1146, %v1150
      %v1152 = vshrl.u32 %v1085, 16
      %v1154 = vrot.slane %v1152, 4
      %v1155 = vor.u32 %v1154, %v1150
      %v1156 = vrot.slane %v1155, 4
      %v1158 = vshll.u32 %v1086, 16
      %v1160 = vrot.slane %v1158, 5
      %v1161 = vsel %vm695, %v1156, %v1160
      %v1162 = vshrl.u32 %v1086, 16
      %v1164 = vrot.slane %v1162, 4
      %v1165 = vor.u32 %v1164, %v1160
      %v1166 = vrot.slane %v1165, 4
      %v1168 = vshll.u32 %v1087, 16
      %v1170 = vrot.slane %v1168, 5
      %v1171 = vsel %vm695, %v1166, %v1170
      %1172 = vrot.lane.b32.xlu0 %v1101, 32
      %v1173 = vpop.permute.xlu0 %1172
      %1174 = vrot.lane.b32.xlu0 %v1111, 32
      %v1175 = vpop.permute.xlu0 %1174
      %1176 = vrot.lane.b32.xlu0 %v1121, 32
      %v1177 = vpop.permute.xlu0 %1176
      %1178 = vrot.lane.b32.xlu0 %v1131, 32
      %v1179 = vpop.permute.xlu0 %1178
      %1180 = vrot.lane.b32.xlu0 %v1141, 32
      %v1181 = vpop.permute.xlu0 %1180
      %1182 = vrot.lane.b32.xlu0 %v1151, 32
      %v1183 = vpop.permute.xlu0 %1182
      %1184 = vrot.lane.b32.xlu0 %v1161, 32
      %v1185 = vpop.permute.xlu0 %1184
      %1186 = vrot.lane.b32.xlu0 %v1171, 32
      %v1187 = vpop.permute.xlu0 %1186
      %vm1196 = vcmask 322816
      %1197 = vst.msk [vmem:[#allocation3] sm:$0xf] %vm1196, %v1173
      %1198 = vst.msk [vmem:[#allocation3 + $0x4] sm:$0xf] %vm1196, %v1175
      %1199 = vst.msk [vmem:[#allocation3 + $0x8] sm:$0xf] %vm1196, %v1177
      %1200 = vst.msk [vmem:[#allocation3 + $0xc] sm:$0xf] %vm1196, %v1179
      %1201 = vst.msk [vmem:[#allocation3 + $0x10] sm:$0xf] %vm1196, %v1181
      %1202 = vst.msk [vmem:[#allocation3 + $0x14] sm:$0xf] %vm1196, %v1183
      %1203 = vst.msk [vmem:[#allocation3 + $0x18] sm:$0xf] %vm1196, %v1185
      %1204 = vst.msk [vmem:[#allocation3 + $0x1c] sm:$0xf] %vm1196, %v1187
      %v1205 = vld [vmem:[#allocation2 + $0x4] sm:$0xe]
      %v1206 = vld [vmem:[#allocation2 + $0x8] sm:$0xf]
      %v1207 = vld [vmem:[#allocation2 + $0xc] sm:$0xf]
      %v1208 = vld [vmem:[#allocation2 + $0x10] sm:$0xf]
      %v1209 = vld [vmem:[#allocation2 + $0x14] sm:$0xf]
      %v1210 = vld [vmem:[#allocation2 + $0x18] sm:$0xf]
      %v1211 = vld [vmem:[#allocation2 + $0x1c] sm:$0xf]
      %v1212 = vld [vmem:[#allocation2 + $0x20] sm:$0xf]
      %v1213 = vld [vmem:[#allocation2 + $0x24] sm:$0x1]
      %v1214 = vsel %vm886, %v1205, 0
      %v1215 = vsel %vm893, %v1206, 0
      %v1216 = vsel %vm900, %v1207, 0
      %v1217 = vsel %vm907, %v1208, 0
      %v1218 = vsel %vm914, %v1209, 0
      %v1219 = vsel %vm921, %v1210, 0
      %v1220 = vsel %vm928, %v1211, 0
      %v1221 = vsel %vm935, %v1212, 0
      %v1222 = vsel %vm942, %v1213, 0
      %v1232 = vrot.slane %v1214, 5
      %v1233 = vrot.slane %v1232, 4
      %v1234 = vrot.slane %v1215, 5
      %v1235 = vsel %vm963, %v1233, %v1234
      %v1236 = vrot.slane %v1234, 4
      %v1237 = vrot.slane %v1216, 5
      %v1238 = vsel %vm963, %v1236, %v1237
      %v1239 = vrot.slane %v1237, 4
      %v1240 = vrot.slane %v1217, 5
      %v1241 = vsel %vm963, %v1239, %v1240
      %v1242 = vrot.slane %v1240, 4
      %v1243 = vrot.slane %v1218, 5
      %v1244 = vsel %vm963, %v1242, %v1243
      %v1245 = vrot.slane %v1243, 4
      %v1246 = vrot.slane %v1219, 5
      %v1247 = vsel %vm963, %v1245, %v1246
      %v1248 = vrot.slane %v1246, 4
      %v1249 = vrot.slane %v1220, 5
      %v1250 = vsel %vm963, %v1248, %v1249
      %v1251 = vrot.slane %v1249, 4
      %v1252 = vrot.slane %v1221, 5
      %v1253 = vsel %vm963, %v1251, %v1252
      %v1254 = vrot.slane %v1252, 4
      %v1255 = vrot.slane %v1222, 5
      %v1256 = vsel %vm963, %v1254, %v1255
      %1257 = vrot.lane.b32.xlu0 %v1235, 40
      %v1258 = vpop.permute.xlu0 %1257
      %1259 = vrot.lane.b32.xlu0 %v1238, 40
      %v1260 = vpop.permute.xlu0 %1259
      %1261 = vrot.lane.b32.xlu0 %v1241, 40
      %v1262 = vpop.permute.xlu0 %1261
      %1263 = vrot.lane.b32.xlu0 %v1244, 40
      %v1264 = vpop.permute.xlu0 %1263
      %1265 = vrot.lane.b32.xlu0 %v1247, 40
      %v1266 = vpop.permute.xlu0 %1265
      %1267 = vrot.lane.b32.xlu0 %v1250, 40
      %v1268 = vpop.permute.xlu0 %1267
      %1269 = vrot.lane.b32.xlu0 %v1253, 40
      %v1270 = vpop.permute.xlu0 %1269
      %1271 = vrot.lane.b32.xlu0 %v1256, 40
      %v1272 = vpop.permute.xlu0 %1271
      %vm1281 = vcmask 388416
      %1282 = vst.msk [vmem:[#allocation3] sm:$0xf] %vm1281, %v1258
      %1283 = vst.msk [vmem:[#allocation3 + $0x4] sm:$0xf] %vm1281, %v1260
      %1284 = vst.msk [vmem:[#allocation3 + $0x8] sm:$0xf] %vm1281, %v1262
      %1285 = vst.msk [vmem:[#allocation3 + $0xc] sm:$0xf] %vm1281, %v1264
      %1286 = vst.msk [vmem:[#allocation3 + $0x10] sm:$0xf] %vm1281, %v1266
      %1287 = vst.msk [vmem:[#allocation3 + $0x14] sm:$0xf] %vm1281, %v1268
      %1288 = vst.msk [vmem:[#allocation3 + $0x18] sm:$0xf] %vm1281, %v1270
      %1289 = vst.msk [vmem:[#allocation3 + $0x1c] sm:$0xf] %vm1281, %v1272
      %v1290 = vld [vmem:[#allocation2 + $0x8] sm:$0xf]
      %v1291 = vld [vmem:[#allocation2 + $0xc] sm:$0xf]
      %v1292 = vld [vmem:[#allocation2 + $0x10] sm:$0xf]
      %v1293 = vld [vmem:[#allocation2 + $0x14] sm:$0xf]
      %v1294 = vld [vmem:[#allocation2 + $0x18] sm:$0xf]
      %v1295 = vld [vmem:[#allocation2 + $0x1c] sm:$0xf]
      %v1296 = vld [vmem:[#allocation2 + $0x20] sm:$0xf]
      %v1297 = vld [vmem:[#allocation2 + $0x24] sm:$0xf]
      %v1298 = vsel %vm660, %v1290, 0
      %v1299 = vsel %vm661, %v1291, 0
      %v1300 = vsel %vm662, %v1292, 0
      %v1301 = vsel %vm663, %v1293, 0
      %v1302 = vsel %vm664, %v1294, 0
      %v1303 = vsel %vm665, %v1295, 0
      %v1304 = vsel %vm666, %v1296, 0
      %v1305 = vsel %vm667, %v1297, 0
      %1314 = vrot.lane.b32.xlu0 %v1298, 48
      %v1315 = vpop.permute.xlu0 %1314
      %1316 = vrot.lane.b32.xlu0 %v1299, 48
      %v1317 = vpop.permute.xlu0 %1316
      %1318 = vrot.lane.b32.xlu0 %v1300, 48
      %v1319 = vpop.permute.xlu0 %1318
      %1320 = vrot.lane.b32.xlu0 %v1301, 48
      %v1321 = vpop.permute.xlu0 %1320
      %1322 = vrot.lane.b32.xlu0 %v1302, 48
      %v1323 = vpop.permute.xlu0 %1322
      %1324 = vrot.lane.b32.xlu0 %v1303, 48
      %v1325 = vpop.permute.xlu0 %1324
      %1326 = vrot.lane.b32.xlu0 %v1304, 48
      %v1327 = vpop.permute.xlu0 %1326
      %1328 = vrot.lane.b32.xlu0 %v1305, 48
      %v1329 = vpop.permute.xlu0 %1328
      %vm1338 = vcmask 454016
      %1339 = vst.msk [vmem:[#allocation3] sm:$0xf] %vm1338, %v1315
      %1340 = vst.msk [vmem:[#allocation3 + $0x4] sm:$0xf] %vm1338, %v1317
      %1341 = vst.msk [vmem:[#allocation3 + $0x8] sm:$0xf] %vm1338, %v1319
      %1342 = vst.msk [vmem:[#allocation3 + $0xc] sm:$0xf] %vm1338, %v1321
      %1343 = vst.msk [vmem:[#allocation3 + $0x10] sm:$0xf] %vm1338, %v1323
      %1344 = vst.msk [vmem:[#allocation3 + $0x14] sm:$0xf] %vm1338, %v1325
      %1345 = vst.msk [vmem:[#allocation3 + $0x18] sm:$0xf] %vm1338, %v1327
      %1346 = vst.msk [vmem:[#allocation3 + $0x1c] sm:$0xf] %vm1338, %v1329
      %v1347 = vld [vmem:[#allocation2 + $0x8] sm:$0xf]
      %v1348 = vld [vmem:[#allocation2 + $0xc] sm:$0xf]
      %v1349 = vld [vmem:[#allocation2 + $0x10] sm:$0xf]
      %v1350 = vld [vmem:[#allocation2 + $0x14] sm:$0xf]
      %v1351 = vld [vmem:[#allocation2 + $0x18] sm:$0xf]
      %v1352 = vld [vmem:[#allocation2 + $0x1c] sm:$0xf]
      %v1353 = vld [vmem:[#allocation2 + $0x20] sm:$0xf]
      %v1354 = vld [vmem:[#allocation2 + $0x24] sm:$0xf]
      %v1355 = vld [vmem:[#allocation2 + $0x28] sm:$0x1]
      %v1357 = vshrl.u32 %v1347, 16
      %v1359 = vrot.slane %v1357, 4
      %v1360 = vshll.u32 %v1347, 16
      %v1362 = vrot.slane %v1360, 5
      %v1363 = vor.u32 %v1359, %v1362
      %v1364 = vrot.slane %v1363, 4
      %v1366 = vshll.u32 %v1348, 16
      %v1368 = vrot.slane %v1366, 5
      %v1369 = vsel %vm695, %v1364, %v1368
      %v1370 = vshrl.u32 %v1348, 16
      %v1372 = vrot.slane %v1370, 4
      %v1373 = vor.u32 %v1372, %v1368
      %v1374 = vrot.slane %v1373, 4
      %v1376 = vshll.u32 %v1349, 16
      %v1378 = vrot.slane %v1376, 5
      %v1379 = vsel %vm695, %v1374, %v1378
      %v1380 = vshrl.u32 %v1349, 16
      %v1382 = vrot.slane %v1380, 4
      %v1383 = vor.u32 %v1382, %v1378
      %v1384 = vrot.slane %v1383, 4
      %v1386 = vshll.u32 %v1350, 16
      %v1388 = vrot.slane %v1386, 5
      %v1389 = vsel %vm695, %v1384, %v1388
      %v1390 = vshrl.u32 %v1350, 16
      %v1392 = vrot.slane %v1390, 4
      %v1393 = vor.u32 %v1392, %v1388
      %v1394 = vrot.slane %v1393, 4
      %v1396 = vshll.u32 %v1351, 16
      %v1398 = vrot.slane %v1396, 5
      %v1399 = vsel %vm695, %v1394, %v1398
      %v1400 = vshrl.u32 %v1351, 16
      %v1402 = vrot.slane %v1400, 4
      %v1403 = vor.u32 %v1402, %v1398
      %v1404 = vrot.slane %v1403, 4
      %v1406 = vshll.u32 %v1352, 16
      %v1408 = vrot.slane %v1406, 5
      %v1409 = vsel %vm695, %v1404, %v1408
      %v1410 = vshrl.u32 %v1352, 16
      %v1412 = vrot.slane %v1410, 4
      %v1413 = vor.u32 %v1412, %v1408
      %v1414 = vrot.slane %v1413, 4
      %v1416 = vshll.u32 %v1353, 16
      %v1418 = vrot.slane %v1416, 5
      %v1419 = vsel %vm695, %v1414, %v1418
      %v1420 = vshrl.u32 %v1353, 16
      %v1422 = vrot.slane %v1420, 4
      %v1423 = vor.u32 %v1422, %v1418
      %v1424 = vrot.slane %v1423, 4
      %v1426 = vshll.u32 %v1354, 16
      %v1428 = vrot.slane %v1426, 5
      %v1429 = vsel %vm695, %v1424, %v1428
      %v1430 = vshrl.u32 %v1354, 16
      %v1432 = vrot.slane %v1430, 4
      %v1433 = vor.u32 %v1432, %v1428
      %v1434 = vrot.slane %v1433, 4
      %v1436 = vshll.u32 %v1355, 16
      %v1438 = vrot.slane %v1436, 5
      %v1439 = vsel %vm695, %v1434, %v1438
      %1440 = vrot.lane.b32.xlu0 %v1369, 56
      %v1441 = vpop.permute.xlu0 %1440
      %1442 = vrot.lane.b32.xlu0 %v1379, 56
      %v1443 = vpop.permute.xlu0 %1442
      %1444 = vrot.lane.b32.xlu0 %v1389, 56
      %v1445 = vpop.permute.xlu0 %1444
      %1446 = vrot.lane.b32.xlu0 %v1399, 56
      %v1447 = vpop.permute.xlu0 %1446
      %1448 = vrot.lane.b32.xlu0 %v1409, 56
      %v1449 = vpop.permute.xlu0 %1448
      %1450 = vrot.lane.b32.xlu0 %v1419, 56
      %v1451 = vpop.permute.xlu0 %1450
      %1452 = vrot.lane.b32.xlu0 %v1429, 56
      %v1453 = vpop.permute.xlu0 %1452
      %1454 = vrot.lane.b32.xlu0 %v1439, 56
      %v1455 = vpop.permute.xlu0 %1454
      %vm1464 = vcmask 519616
      %1465 = vst.msk [vmem:[#allocation3] sm:$0xf] %vm1464, %v1441
      %1466 = vst.msk [vmem:[#allocation3 + $0x4] sm:$0xf] %vm1464, %v1443
      %1467 = vst.msk [vmem:[#allocation3 + $0x8] sm:$0xf] %vm1464, %v1445
      %1468 = vst.msk [vmem:[#allocation3 + $0xc] sm:$0xf] %vm1464, %v1447
      %1469 = vst.msk [vmem:[#allocation3 + $0x10] sm:$0xf] %vm1464, %v1449
      %1470 = vst.msk [vmem:[#allocation3 + $0x14] sm:$0xf] %vm1464, %v1451
      %1471 = vst.msk [vmem:[#allocation3 + $0x18] sm:$0xf] %vm1464, %v1453
      %1472 = vst.msk [vmem:[#allocation3 + $0x1c] sm:$0xf] %vm1464, %v1455
      %v1473 = vld [vmem:[#allocation2 + $0x8] sm:$0xe]
      %v1474 = vld [vmem:[#allocation2 + $0xc] sm:$0xf]
      %v1475 = vld [vmem:[#allocation2 + $0x10] sm:$0xf]
      %v1476 = vld [vmem:[#allocation2 + $0x14] sm:$0xf]
      %v1477 = vld [vmem:[#allocation2 + $0x18] sm:$0xf]
      %v1478 = vld [vmem:[#allocation2 + $0x1c] sm:$0xf]
      %v1479 = vld [vmem:[#allocation2 + $0x20] sm:$0xf]
      %v1480 = vld [vmem:[#allocation2 + $0x24] sm:$0xf]
      %v1481 = vld [vmem:[#allocation2 + $0x28] sm:$0x1]
      %v1482 = vsel %vm886, %v1473, 0
      %v1483 = vsel %vm893, %v1474, 0
      %v1484 = vsel %vm900, %v1475, 0
      %v1485 = vsel %vm907, %v1476, 0
      %v1486 = vsel %vm914, %v1477, 0
      %v1487 = vsel %vm921, %v1478, 0
      %v1488 = vsel %vm928, %v1479, 0
      %v1489 = vsel %vm935, %v1480, 0
      %v1490 = vsel %vm942, %v1481, 0
      %v1500 = vrot.slane %v1482, 5
      %v1501 = vrot.slane %v1500, 4
      %v1502 = vrot.slane %v1483, 5
      %v1503 = vsel %vm963, %v1501, %v1502
      %v1504 = vrot.slane %v1502, 4
      %v1505 = vrot.slane %v1484, 5
      %v1506 = vsel %vm963, %v1504, %v1505
      %v1507 = vrot.slane %v1505, 4
      %v1508 = vrot.slane %v1485, 5
      %v1509 = vsel %vm963, %v1507, %v1508
      %v1510 = vrot.slane %v1508, 4
      %v1511 = vrot.slane %v1486, 5
      %v1512 = vsel %vm963, %v1510, %v1511
      %v1513 = vrot.slane %v1511, 4
      %v1514 = vrot.slane %v1487, 5
      %v1515 = vsel %vm963, %v1513, %v1514
      %v1516 = vrot.slane %v1514, 4
      %v1517 = vrot.slane %v1488, 5
      %v1518 = vsel %vm963, %v1516, %v1517
      %v1519 = vrot.slane %v1517, 4
      %v1520 = vrot.slane %v1489, 5
      %v1521 = vsel %vm963, %v1519, %v1520
      %v1522 = vrot.slane %v1520, 4
      %v1523 = vrot.slane %v1490, 5
      %v1524 = vsel %vm963, %v1522, %v1523
      %1525 = vrot.lane.b32.xlu0 %v1503, 64
      %v1526 = vpop.permute.xlu0 %1525
      %1527 = vrot.lane.b32.xlu0 %v1506, 64
      %v1528 = vpop.permute.xlu0 %1527
      %1529 = vrot.lane.b32.xlu0 %v1509, 64
      %v1530 = vpop.permute.xlu0 %1529
      %1531 = vrot.lane.b32.xlu0 %v1512, 64
      %v1532 = vpop.permute.xlu0 %1531
      %1533 = vrot.lane.b32.xlu0 %v1515, 64
      %v1534 = vpop.permute.xlu0 %1533
      %1535 = vrot.lane.b32.xlu0 %v1518, 64
      %v1536 = vpop.permute.xlu0 %1535
      %1537 = vrot.lane.b32.xlu0 %v1521, 64
      %v1538 = vpop.permute.xlu0 %1537
      %1539 = vrot.lane.b32.xlu0 %v1524, 64
      %v1540 = vpop.permute.xlu0 %1539
      %vm1549 = vcmask 585216
      %1550 = vst.msk [vmem:[#allocation3] sm:$0xf] %vm1549, %v1526
      %1551 = vst.msk [vmem:[#allocation3 + $0x4] sm:$0xf] %vm1549, %v1528
      %1552 = vst.msk [vmem:[#allocation3 + $0x8] sm:$0xf] %vm1549, %v1530
      %1553 = vst.msk [vmem:[#allocation3 + $0xc] sm:$0xf] %vm1549, %v1532
      %1554 = vst.msk [vmem:[#allocation3 + $0x10] sm:$0xf] %vm1549, %v1534
      %1555 = vst.msk [vmem:[#allocation3 + $0x14] sm:$0xf] %vm1549, %v1536
      %1556 = vst.msk [vmem:[#allocation3 + $0x18] sm:$0xf] %vm1549, %v1538
      %1557 = vst.msk [vmem:[#allocation3 + $0x1c] sm:$0xf] %vm1549, %v1540
      %v1558 = vld [vmem:[#allocation3] sm:$0xf]
      %v1559 = vld [vmem:[#allocation3 + $0x4] sm:$0xf]
      %v1560 = vld [vmem:[#allocation3 + $0x8] sm:$0xf]
      %v1561 = vld [vmem:[#allocation3 + $0xc] sm:$0xf]
      %v1562 = vld [vmem:[#allocation3 + $0x10] sm:$0xf]
      %v1563 = vld [vmem:[#allocation3 + $0x14] sm:$0xf]
      %v1564 = vld [vmem:[#allocation3 + $0x18] sm:$0xf]
      %v1565 = vld [vmem:[#allocation3 + $0x1c] sm:$0xf]
      %v1566 = vld [vmem:[%s2] sm:$0xf]
      %v1567 = vld [vmem:[%s2 + $0x4] sm:$0xf]
      %v1568 = vld [vmem:[%s2 + $0x8] sm:$0xf]
      %v1569 = vld [vmem:[%s2 + $0xc] sm:$0xf]
      %v1570 = vld [vmem:[%s2 + $0x10] sm:$0xf]
      %v1571 = vld [vmem:[%s2 + $0x14] sm:$0xf]
      %v1572 = vld [vmem:[%s2 + $0x18] sm:$0xf]
      %v1573 = vld [vmem:[%s2 + $0x1c] sm:$0xf]
      %v1574 = vld [vmem:[%s2 + $0x20] sm:$0xf]
      %v1583 = vunpack.c.l.b16 %v1558
      %v1584 = vunpack.c.l.b16 %v1559
      %v1585 = vunpack.c.l.b16 %v1560
      %v1586 = vunpack.c.l.b16 %v1561
      %v1587 = vunpack.c.l.b16 %v1562
      %v1588 = vunpack.c.l.b16 %v1563
      %v1589 = vunpack.c.l.b16 %v1564
      %v1590 = vunpack.c.l.b16 %v1565
      %v1591 = vpack.c.b16 %v1584, %v1583
      %v1592 = vpack.c.b16 %v1586, %v1585
      %v1593 = vpack.c.b16 %v1588, %v1587
      %v1594 = vpack.c.b16 %v1590, %v1589
      %v1604 = vunpack.c.l.b16 %v1566
      %v1605 = vunpack.c.l.b16 %v1567
      %v1606 = vunpack.c.l.b16 %v1568
      %v1607 = vunpack.c.l.b16 %v1569
      %v1608 = vunpack.c.l.b16 %v1570
      %v1609 = vunpack.c.l.b16 %v1571
      %v1610 = vunpack.c.l.b16 %v1572
      %v1611 = vunpack.c.l.b16 %v1573
      %v1612 = vunpack.c.l.b16 %v1574
      %v1613 = vpack.c.b16 %v1605, %v1604
      %v1614 = vpack.c.b16 %v1607, %v1606
      %v1615 = vpack.c.b16 %v1609, %v1608
      %v1616 = vpack.c.b16 %v1611, %v1610
      %v1617 = vpack.c.b16 %v1612, %v1612
      %vm1622 = vcmask 588800
      %v1624 = vsel %vm1622, %v1591, 0
      %v1627 = vsel %vm1622, %v1592, 0
      %v1630 = vsel %vm1622, %v1593, 0
      %v1633 = vsel %vm1622, %v1594, 0
      %vm1635 = vcmask 1043456
      %v1637 = vsel %vm1635, %v1617, 0
      %1639 = vmatpush.bf16.msra.mxu0 0
      %1640 = vmatpush.bf16.msra.mxu0 0
      %1641 = vmatpush.bf16.msra.mxu0 0
      %1642 = vmatpush.bf16.msra.mxu0 %v1637
      %1643 = vmatpush.bf16.msra.mxu0 %v1616
      %1644 = vmatpush.bf16.msra.mxu0 %v1615
      %1645 = vmatpush.bf16.msra.mxu0 %v1614
      %1646 = vmatpush.bf16.msra.mxu0 %v1613
      %1647 = vmatmul.bf16.gmra.mxu0 %v1624
      %v1648 = vpop.f32.mrf.mxu0
      %v1649 = vadd.f32 0.0, %v1648
      %v1650 = vpop.f32.mrf.mxu0
      %v1651 = vadd.f32 0.0, %v1650
      %1652 = vmatmul.bf16.gmra.mxu0 %v1627
      %v1653 = vpop.f32.mrf.mxu0
      %v1654 = vadd.f32 0.0, %v1653
      %v1655 = vpop.f32.mrf.mxu0
      %v1656 = vadd.f32 0.0, %v1655
      %1657 = vmatmul.bf16.gmra.mxu0 %v1630
      %v1658 = vpop.f32.mrf.mxu0
      %v1659 = vadd.f32 0.0, %v1658
      %v1660 = vpop.f32.mrf.mxu0
      %v1661 = vadd.f32 0.0, %v1660
      %1662 = vmatmul.bf16.gmra.mxu0 %v1633
      %v1663 = vpop.f32.mrf.mxu0
      %v1664 = vadd.f32 0.0, %v1663
      %v1665 = vpop.f32.mrf.mxu0
      %v1666 = vadd.f32 0.0, %v1665
      %1667 = vdwg.mxu0
      %v1668 = vld [vmem:[%s5] sm:$0x1]
      %v1669 = vperm.slane %v1668, 0
      %v1670 = vmul.f32 %v1649, %v1669
      %v1671 = vmul.f32 %v1651, %v1669
      %v1672 = vmul.f32 %v1654, %v1669
      %v1673 = vmul.f32 %v1656, %v1669
      %v1674 = vmul.f32 %v1659, %v1669
      %v1675 = vmul.f32 %v1661, %v1669
      %v1676 = vmul.f32 %v1664, %v1669
      %v1677 = vmul.f32 %v1666, %v1669
      %v1678 = vld [vmem:[%s5 + $0x1] sm:$0x1]
      %v1679 = vperm.slane %v1678, 0
      %v1680 = vadd.f32 %v1670, %v1679
      %v1681 = vadd.f32 %v1671, %v1679
      %v1682 = vadd.f32 %v1672, %v1679
      %v1683 = vadd.f32 %v1673, %v1679
      %v1684 = vadd.f32 %v1674, %v1679
      %v1685 = vadd.f32 %v1675, %v1679
      %v1686 = vadd.f32 %v1676, %v1679
      %v1687 = vadd.f32 %v1677, %v1679
      %v1688 = vmax.f32 %v1680, 0.0
      %v1689 = vmax.f32 %v1681, 0.0
      %v1690 = vmax.f32 %v1682, 0.0
      %v1691 = vmax.f32 %v1683, 0.0
      %v1692 = vmax.f32 %v1684, 0.0
      %v1693 = vmax.f32 %v1685, 0.0
      %v1694 = vmax.f32 %v1686, 0.0
      %v1695 = vmax.f32 %v1687, 0.0
      %v1696 = vpack.c.bf16 %v1689, %v1688
      %v1697 = vpack.c.bf16 %v1691, %v1690
      %v1698 = vpack.c.bf16 %v1693, %v1692
      %v1699 = vpack.c.bf16 %v1695, %v1694
      %v1700 = vld [vmem:[%s3] sm:$0xf]
      %vm1701 = vcmask 64512
      %v1703 = vsel %vm1701, %v1696, 0
      %v1706 = vsel %vm1701, %v1697, 0
      %v1709 = vsel %vm1701, %v1698, 0
      %v1712 = vsel %vm1701, %v1699, 0
      %v1715 = vsel %vm1635, %v1700, 0
      %1717 = vmatpush.bf16.msra.mxu0 0
      %1718 = vmatpush.bf16.msra.mxu0 0
      %1719 = vmatpush.bf16.msra.mxu0 0
      %1720 = vmatpush.bf16.msra.mxu0 0
      %1721 = vmatpush.bf16.msra.mxu0 0
      %1722 = vmatpush.bf16.msra.mxu0 0
      %1723 = vmatpush.bf16.msra.mxu0 0
      %1724 = vmatpush.bf16.msra.mxu0 %v1715
      %1725 = vmatmul.bf16.gmra.mxu0 %v1703
      %v1726 = vpop.f32.mrf.mxu0
      %v1727 = vadd.f32 0.0, %v1726
      %v1728 = vpop.f32.mrf.mxu0
      %v1729 = vadd.f32 0.0, %v1728
      %1730 = vmatmul.bf16.gmra.mxu0 %v1706
      %v1731 = vpop.f32.mrf.mxu0
      %v1732 = vadd.f32 0.0, %v1731
      %v1733 = vpop.f32.mrf.mxu0
      %v1734 = vadd.f32 0.0, %v1733
      %1735 = vmatmul.bf16.gmra.mxu0 %v1709
      %v1736 = vpop.f32.mrf.mxu0
      %v1737 = vadd.f32 0.0, %v1736
      %v1738 = vpop.f32.mrf.mxu0
      %v1739 = vadd.f32 0.0, %v1738
      %1740 = vmatmul.bf16.gmra.mxu0 %v1712
      %v1741 = vpop.f32.mrf.mxu0
      %v1742 = vadd.f32 0.0, %v1741
      %v1743 = vpop.f32.mrf.mxu0
      %v1744 = vadd.f32 0.0, %v1743
      %1745 = vdwg.mxu0
      %v1746 = vld [vmem:[%s6] sm:$0x1]
      %v1747 = vperm.slane %v1746, 0
      %v1748 = vmul.f32 %v1727, %v1747
      %v1749 = vmul.f32 %v1729, %v1747
      %v1750 = vmul.f32 %v1732, %v1747
      %v1751 = vmul.f32 %v1734, %v1747
      %v1752 = vmul.f32 %v1737, %v1747
      %v1753 = vmul.f32 %v1739, %v1747
      %v1754 = vmul.f32 %v1742, %v1747
      %v1755 = vmul.f32 %v1744, %v1747
      %v1756 = vld [vmem:[%s6 + $0x1] sm:$0x1]
      %v1757 = vperm.slane %v1756, 0
      %v1758 = vadd.f32 %v1748, %v1757
      %v1759 = vadd.f32 %v1749, %v1757
      %v1760 = vadd.f32 %v1750, %v1757
      %v1761 = vadd.f32 %v1751, %v1757
      %v1762 = vadd.f32 %v1752, %v1757
      %v1763 = vadd.f32 %v1753, %v1757
      %v1764 = vadd.f32 %v1754, %v1757
      %v1765 = vadd.f32 %v1755, %v1757
      %v1766 = vld [vmem:[%s273] sm:$0xf]
      %v1767 = vld [vmem:[%s273 + $0x4] sm:$0xf]
      %v1768 = vld [vmem:[%s273 + $0x8] sm:$0xf]
      %v1769 = vld [vmem:[%s273 + $0xc] sm:$0xf]
      %v1770 = vld [vmem:[%s273 + $0x10] sm:$0xf]
      %v1771 = vld [vmem:[%s273 + $0x14] sm:$0xf]
      %v1772 = vld [vmem:[%s273 + $0x18] sm:$0xf]
      %v1773 = vld [vmem:[%s273 + $0x1c] sm:$0xf]
      %v1774 = vunpack.c.l.bf16 %v1766
      %v1775 = vunpack.c.l.bf16 %v1767
      %v1776 = vunpack.c.l.bf16 %v1768
      %v1777 = vunpack.c.l.bf16 %v1769
      %v1778 = vunpack.c.l.bf16 %v1770
      %v1779 = vunpack.c.l.bf16 %v1771
      %v1780 = vunpack.c.l.bf16 %v1772
      %v1781 = vunpack.c.l.bf16 %v1773
      %v1782 = vadd.f32 %v1758, %v1774
      %v1783 = vadd.f32 %v1759, %v1775
      %v1784 = vadd.f32 %v1760, %v1776
      %v1785 = vadd.f32 %v1761, %v1777
      %v1786 = vadd.f32 %v1762, %v1778
      %v1787 = vadd.f32 %v1763, %v1779
      %v1788 = vadd.f32 %v1764, %v1780
      %v1789 = vadd.f32 %v1765, %v1781
      %v1790 = vmax.f32 %v1782, 0.0
      %v1791 = vmax.f32 %v1783, 0.0
      %v1792 = vmax.f32 %v1784, 0.0
      %v1793 = vmax.f32 %v1785, 0.0
      %v1794 = vmax.f32 %v1786, 0.0
      %v1795 = vmax.f32 %v1787, 0.0
      %v1796 = vmax.f32 %v1788, 0.0
      %v1797 = vmax.f32 %v1789, 0.0
      %1798 = vst.msk [vmem:[%s278] sm:$0xff] %vm326, %v1790
      %1799 = vst.msk [vmem:[%s278 + $0x8] sm:$0xff] %vm326, %v1791
      %1800 = vst.msk [vmem:[%s278 + $0x10] sm:$0xff] %vm326, %v1792
      %1801 = vst.msk [vmem:[%s278 + $0x18] sm:$0xff] %vm326, %v1793
      %1802 = vst.msk [vmem:[%s278 + $0x20] sm:$0xff] %vm326, %v1794
      %1803 = vst.msk [vmem:[%s278 + $0x28] sm:$0xff] %vm326, %v1795
      %1804 = vst.msk [vmem:[%s278 + $0x30] sm:$0xff] %vm326, %v1796
      %1805 = vst.msk [vmem:[%s278 + $0x38] sm:$0xff] %vm326, %v1797
      %p1806 = scmp.lt.s32.totalorder %s18, 1
      %s1807 = scalar_select %p1806, %s18, 1
      %s1808 = smul.addr %s1807, 8
      %s1809 = smul.addr %s1808, 8
      %s1810 = scalar_lea.vmem %s7, %s1809
      // Predicated region
      $region49: #{tpu_custom_call.1} parent=47 // pred_check
        %p1811 = pneg %p188
      $region50: #{tpu_custom_call.1} parent=47 // pred_check_branch
        %1813 = sbr.rel (%p1811) target = $region52
      $region51: #{tpu_custom_call.1} parent=47 // pred_region
        _
      $region52: #{tpu_custom_call.1} parent=47 // pred_fallthru
        _
    $region48: #{tpu_custom_call.1} parent=5 // pred_fallthru
      _
    %p1814 = scmp.le.s32.totalorder 2, %s13
    // Predicated region
    $region53: #{tpu_custom_call.1} parent=5 // pred_check
      %p1815 = pneg %p1814
    $region54: #{tpu_custom_call.1} parent=5 // pred_check_branch
      %1817 = sbr.rel (%p1815) target = $region56
    $region55: #{tpu_custom_call.1} parent=5 // pred_region
      %s1818 = ssub.s32 %s13, 2
      // Predicated region
      $region57: #{tpu_custom_call.1} parent=55 // pred_check
        %p1819 = pneg %p194
      $region58: #{tpu_custom_call.1} parent=55 // pred_check_branch
        %1821 = sbr.rel (%p1819) target = $region60
      $region59: #{tpu_custom_call.1} parent=55 // pred_region
        %p1822 = scmp.lt.s32.totalorder %s19, 1
        %s1823 = scalar_select %p1822, %s19, 1
        %s1824 = smul.addr %s1823, 8
        %s1825 = smul.addr %s1824, 8
        %s1826 = scalar_lea.vmem %s7, %s1825
      $region60: #{tpu_custom_call.1} parent=55 // pred_fallthru
        _
    $region56: #{tpu_custom_call.1} parent=5 // pred_fallthru
      _
  $region6: #{tpu_custom_call.1} parent=0 // loop_footer
    %s17 = sadd.s32 1, %s13
  $region7: #{tpu_custom_call.1} parent=0 // loop_footer_branch
    %12 = sbr.rel target = $region3
  $region8: #{tpu_custom_call.1} parent=0 // loop_exit
    _

</llo_original>
